<compile_context>
chip_gen: v7x
topology: tpu7x:2x2x1
jax: 0.10.0
libtpu: 0.0.40
codegen_flags: <defaults>
</compile_context>

<pallas_src>
import jax
import jax.numpy as jnp
from jax import lax
from jax.experimental import pallas as pl
from jax.experimental.pallas import tpu as pltpu

LANES = 128


# ------------------------------ layout ------------------------------

def compute_layout(I, H, O, L):
    """Row layout of the single (rows, 128) f32 parameter slab.

    Blocks (all row offsets multiples of 8):
      w_in0   : (Ip, 128)   rows 0..I-1   cols [0:H)=Wih_f^T, [H:2H)=Wih_b^T
      w_in_l  : (2H, 128)   per layer l>=1
      whh_l   : (2H, 128)   per layer, block-diag([Whh_f^T, Whh_b^T]) in cols [0:2H)
      fc1_w   : (2H, 128)   cols [0:H) = fc1_w^T
      fc2_w   : (H, 128)    cols [0:O) = fc2_w^T   (lane-dense 128-wide output)
      biases  : one row per bias, each on its own 8-row boundary:
                  layer l bias  -> row ofs_bias + 8*l       cols [0:2H)
                  fc1 bias      -> row ofs_bias + 8*L       cols [0:H)
                  fc2 bias      -> row ofs_bias + 8*(L+1)   cols [0:O)
    """
    H2 = 2 * H
    assert H % 8 == 0 and H2 <= LANES and O <= LANES
    Ip = max(8, ((I + 7) // 8) * 8)

    r = 0
    ofs_w_in = [(r, Ip)]
    r += Ip
    for _ in range(1, L):
        ofs_w_in.append((r, H2))
        r += H2
    ofs_whh = []
    for _ in range(L):
        ofs_whh.append(r)
        r += H2
    ofs_fc1 = r
    r += H2
    ofs_fc2 = r
    r += H
    ofs_bias = r
    r += 8 * (L + 2)
    total_rows = ((r + 7) // 8) * 8
    return Ip, (ofs_w_in, ofs_whh, ofs_fc1, ofs_fc2, ofs_bias), total_rows


# ------------------------------ kernel ------------------------------

def make_rnn_model_kernel(T, Bp, Ip, H, O, L, offsets):
    """Single-invocation kernel for the whole forward pass.

    Inputs (whole-array VMEM refs):
      x_flat : (T*Bp, Ip)     time-major, batch padded to Bp, input padded to Ip
      params : (rows, 128)    packed parameter slab (see compute_layout)
    Output:
      out    : (Bp, 128)      lane-dense; wrapper slices [:B, :O]
    """
    H2 = 2 * H
    f32 = jnp.float32
    bf16 = jnp.bfloat16
    ofs_w_in, ofs_whh, ofs_fc1, ofs_fc2, ofs_bias = offsets

    def kernel(x_ref, p_ref, out_ref):
        # Lane masks: lanes [0, H) = forward direction, [H, 2H) = backward.
        lane_full = lax.broadcasted_iota(jnp.int32, (T * Bp, H2), 1)
        fwd_mask_full = lane_full < H
        lane_row = lax.broadcasted_iota(jnp.int32, (Bp, H2), 1)
        fwd_mask_row = lane_row < H

        # Layer-0 input, cast once for the hoisted projection matmul.
        inp_bf = x_ref[...].astype(bf16)                    # (T*Bp, Ip)

        hf = None
        for layer in range(L):
            r0, nrows = ofs_w_in[layer]
            w_in = p_ref[r0:r0 + nrows, 0:H2].astype(bf16)   # (in, 2H)
            wr = ofs_whh[layer]
            whh = p_ref[wr:wr + H2, 0:H2].astype(bf16)       # (2H, 2H) block-diag
            br = ofs_bias + 8 * layer
            b = p_ref[br:br + 1, 0:H2]                       # (1, 2H) f32

            # Hoisted input projection for all timesteps (off the serial chain).
            proj = jnp.dot(inp_bf, w_in, preferred_element_type=f32) + b  # (T*Bp, 2H)

            # Time-reversed copy of the T batch-blocks (backward direction),
            # then ONE select builds every step's pre-activation for both dirs.
            proj_rev = jnp.concatenate(
                [proj[(T - 1 - t) * Bp:(T - t) * Bp, :] for t in range(T)], axis=0)
            pre_all = jnp.where(fwd_mask_full, proj, proj_rev)            # (T*Bp, 2H)

            # Fused bidirectional recurrence, fully unrolled. Step body:
            # static slice + bf16 cast + single-pass MXU dot + add + tanh (f32).
            h = jnp.zeros((Bp, H2), f32)
            hf = [None] * T                                   # state at step i
            for i in range(T):
                pre = pre_all[i * Bp:(i + 1) * Bp, :]
                h = jnp.tanh(pre + jnp.dot(h.astype(bf16), whh,
                                           preferred_element_type=f32))
                hf[i] = h
            # hf[i] fwd half = h_f(i); bwd half = h_b(T-1-i).

            if layer < L - 1:
                # out[t] = [h_f(t) | h_b(t)] = select(state t, state T-1-t):
                # one select over the whole slab instead of T per-row selects.
                h_all = jnp.concatenate(hf, axis=0)           # block t = state t
                h_rev = jnp.concatenate(hf[::-1], axis=0)     # block t = state T-1-t
                inp_bf = jnp.where(fwd_mask_full, h_all, h_rev).astype(bf16)

        # Head on out[:, -1, :] = [h_f(T-1) | h_b(T-1)] = select(state T-1, state 0).
        last = jnp.where(fwd_mask_row, hf[T - 1], hf[0])      # (Bp, 2H) f32
        fc1_w = p_ref[ofs_fc1:ofs_fc1 + H2, 0:H].astype(bf16)           # (2H, H)
        fc1_b = p_ref[ofs_bias + 8 * L:ofs_bias + 8 * L + 1, 0:H]       # (1, H)
        fc2_w = p_ref[ofs_fc2:ofs_fc2 + H, :].astype(bf16)              # (H, 128)
        fc2_b = p_ref[ofs_bias + 8 * (L + 1):ofs_bias + 8 * (L + 1) + 1, :]  # (1, 128)

        h1 = jnp.dot(last.astype(bf16), fc1_w, preferred_element_type=f32) + fc1_b
        h1 = jnp.maximum(h1, 0.0)
        out = jnp.dot(h1.astype(bf16), fc2_w, preferred_element_type=f32) + fc2_b
        out_ref[...] = out                                    # (Bp, 128) dense store

    return kernel


# ------------------------------ wrapper ------------------------------

def rnn_model_forward(x, param_slab, H, O, L):
    """x: (B, T, I) batch-first, like the PyTorch module."""
    B, T, I = x.shape
    Ip, offsets, _ = compute_layout(I, H, O, L)
    Bp = max(8, ((B + 7) // 8) * 8)                           # full sublanes

    x_tm = jnp.transpose(x, (1, 0, 2)).astype(jnp.float32)    # (T, B, I)
    x_tm = jnp.pad(x_tm, ((0, 0), (0, Bp - B), (0, Ip - I)))  # (T, Bp, Ip)
    x_flat = x_tm.reshape(T * Bp, Ip)                         # time-major rows

    vmem = pltpu.MemorySpace.VMEM
    out = pl.pallas_call(
        make_rnn_model_kernel(T, Bp, Ip, H, O, L, offsets),
        out_shape=jax.ShapeDtypeStruct((Bp, LANES), jnp.float32),
        in_specs=[pl.BlockSpec(memory_space=vmem),
                  pl.BlockSpec(memory_space=vmem)],
        out_specs=pl.BlockSpec(memory_space=vmem),
    )(x_flat, param_slab)
    return out[:B, :O]


# ------------------------- parameter construction -------------------------

def init_params(key, I, H, O, L):
    """Deterministic init mirroring the PyTorch module's parameter shapes.

    Returns (slab, structured):
      slab       : (rows, 128) f32 packed parameter buffer (kernel input)
      structured : unpacked per-direction params for the pure-JAX reference.
    """
    H2 = 2 * H
    Ip, offsets, total_rows = compute_layout(I, H, O, L)
    ofs_w_in, ofs_whh, ofs_fc1, ofs_fc2, ofs_bias = offsets
    k = 1.0 / jnp.sqrt(jnp.float32(H))

    def uni(subkey, shape, scale):
        return jax.random.uniform(subkey, shape, jnp.float32, -scale, scale)

    keys = iter(jax.random.split(key, L * 2 * 4 + 4))
    slab = jnp.zeros((total_rows, LANES), jnp.float32)

    rnn_struct = []
    for layer in range(L):
        in_l = I if layer == 0 else H2
        r0, _ = ofs_w_in[layer]
        wr = ofs_whh[layer]
        br = ofs_bias + 8 * layer
        dirs = []
        for d in range(2):
            w_ih = uni(next(keys), (H, in_l), k)   # PyTorch weight_ih_l{l}{_reverse}
            w_hh = uni(next(keys), (H, H), k)      # PyTorch weight_hh
            b_ih = uni(next(keys), (H,), k)
            b_hh = uni(next(keys), (H,), k)
            wih_t = jnp.transpose(w_ih)            # (in_l, H)
            whh_t = jnp.transpose(w_hh)            # (H, H)
            b = (b_ih + b_hh).reshape(1, H)        # biases always appear summed
            dirs.append((wih_t, whh_t, b))
            c0 = d * H
            slab = slab.at[r0:r0 + in_l, c0:c0 + H].set(wih_t)
            slab = slab.at[wr + d * H:wr + (d + 1) * H, c0:c0 + H].set(whh_t)
            slab = slab.at[br, c0:c0 + H].set(b[0])
        rnn_struct.append(dirs)

    kf1 = 1.0 / jnp.sqrt(jnp.float32(H2))
    fc1_w = uni(next(keys), (H, H2), kf1)
    fc1_b = uni(next(keys), (H,), kf1)
    kf2 = 1.0 / jnp.sqrt(jnp.float32(H))
    fc2_w = uni(next(keys), (O, H), kf2)
    fc2_b = uni(next(keys), (O,), kf2)

    fc1_wt = jnp.transpose(fc1_w)                  # (2H, H)
    fc2_wt = jnp.transpose(fc2_w)                  # (H, O)
    slab = slab.at[ofs_fc1:ofs_fc1 + H2, 0:H].set(fc1_wt)
    slab = slab.at[ofs_fc2:ofs_fc2 + H, 0:O].set(fc2_wt)
    slab = slab.at[ofs_bias + 8 * L, 0:H].set(fc1_b)
    slab = slab.at[ofs_bias + 8 * (L + 1), 0:O].set(fc2_b)

    structured = (rnn_struct, fc1_wt, fc1_b.reshape(1, H), fc2_wt, fc2_b.reshape(1, O))
    return slab, structured


# ------------------------- pure-JAX reference -------------------------

def _mm(a, b):
    # Mirrors JAX/XLA's default TPU matmul precision (bf16 operands, f32 accumulate),
    # which is exactly what the kernel performs explicitly on the MXU.
    return jnp.dot(a.astype(jnp.bfloat16), b.astype(jnp.bfloat16),
                   preferred_element_type=jnp.float32)


def reference_forward(x, structured, H, L):
    rnn_struct, fc1_wt, fc1_b, fc2_wt, fc2_b = structured
    B, T, _ = x.shape
    inp = x.astype(jnp.float32)
    for layer in range(L):
        outs = []
        for d in range(2):
            wih_t, whh_t, b = rnn_struct[layer][d]
            h = jnp.zeros((B, H), jnp.float32)
            seq = [None] * T
            ts = range(T) if d == 0 else range(T - 1, -1, -1)
            for t in ts:
                h = jnp.tanh(_mm(inp[:, t, :], wih_t) + _mm(h, whh_t) + b)
                seq[t] = h
            outs.append(jnp.stack(seq, axis=1))    # (B, T, H)
        inp = jnp.concatenate(outs, axis=-1)       # (B, T, 2H)
    last = inp[:, -1, :]
    h1 = jnp.maximum(_mm(last, fc1_wt) + fc1_b, 0.0)
    return _mm(h1, fc2_wt) + fc2_b


if __name__ == "__main__":
    # Small shapes consistent with the module: batch=2, seq=8, input=4,
    # hidden=32, output=3, num_layers=2.
    B, T, I, H, O, L = 2, 8, 4, 32, 3, 2

    key = jax.random.PRNGKey(0)
    kx, kp = jax.random.split(key)
    x = jax.random.normal(kx, (B, T, I), jnp.float32)

    param_slab, structured = init_params(kp, I, H, O, L)

    out = rnn_model_forward(x, param_slab, H, O, L)
    out = jax.block_until_ready(out)

    ref = reference_forward(x, structured, H, L)
    assert out.shape == (B, O)
    assert jnp.allclose(out, ref, atol=1e-3, rtol=1e-3), (
        f"max abs err = {jnp.max(jnp.abs(out - ref))}")

    print("KERNEL_OK")
</pallas_src>

<mosaic_0001>
module attributes {stable_mosaic.version = 11 : i64} {
  func.func @kernel(%arg0: memref<64x8xf32, #tpu.memory_space<vmem>>, %arg1: memref<328x128xf32, #tpu.memory_space<vmem>>, %arg2: memref<8x128xf32, #tpu.memory_space<vmem>>) attributes {dimension_semantics = [], scalar_prefetch = 0 : i64, scratch_operands = 0 : i64, tpu.core_type = #tpu.core_type<tc>} {
    %0 = tpu.iota {dimensions = array<i32: 1>} : vector<64x64xi32>
    %c32_i32 = arith.constant 32 : i32
    %1 = vector.broadcast %c32_i32 : i32 to vector<64x64xi32>
    %2 = arith.cmpi slt, %0, %1 : vector<64x64xi32>
    %3 = tpu.iota {dimensions = array<i32: 1>} : vector<8x64xi32>
    %c32_i32_0 = arith.constant 32 : i32
    %4 = vector.broadcast %c32_i32_0 : i32 to vector<8x64xi32>
    %5 = arith.cmpi slt, %3, %4 : vector<8x64xi32>
    %c0 = arith.constant 0 : index
    %c0_1 = arith.constant 0 : index
    %6 = vector.load %arg0[%c0, %c0_1] : memref<64x8xf32, #tpu.memory_space<vmem>>, vector<64x8xf32>
    %7 = arith.truncf %6 : vector<64x8xf32> to vector<64x8xbf16>
    %c0_2 = arith.constant 0 : index
    %c0_3 = arith.constant 0 : index
    %8 = vector.load %arg1[%c0_2, %c0_3] : memref<328x128xf32, #tpu.memory_space<vmem>>, vector<8x64xf32>
    %9 = arith.truncf %8 : vector<8x64xf32> to vector<8x64xbf16>
    %c72 = arith.constant 72 : index
    %c0_4 = arith.constant 0 : index
    %10 = vector.load %arg1[%c72, %c0_4] : memref<328x128xf32, #tpu.memory_space<vmem>>, vector<64x64xf32>
    %11 = arith.truncf %10 : vector<64x64xf32> to vector<64x64xbf16>
    %c296 = arith.constant 296 : index
    %c0_5 = arith.constant 0 : index
    %12 = vector.load %arg1[%c296, %c0_5] : memref<328x128xf32, #tpu.memory_space<vmem>>, vector<1x64xf32>
    %cst = arith.constant dense<0.000000e+00> : vector<64x64xf32>
    %13 = tpu.matmul %7, %9, %cst {dimension_numbers = #tpu.dot_dimension_numbers<[1], [0], [0], [1], [0, 0, 1, 1], [], []>} : vector<64x8xbf16>, vector<8x64xbf16>, vector<64x64xf32> -> vector<64x64xf32>
    %14 = vector.broadcast %12 : vector<1x64xf32> to vector<64x64xf32>
    %15 = arith.addf %13, %14 : vector<64x64xf32>
    %16 = vector.extract_strided_slice %15 {offsets = [56, 0], sizes = [8, 64], strides = [1, 1]} : vector<64x64xf32> to vector<8x64xf32>
    %17 = vector.extract_strided_slice %15 {offsets = [48, 0], sizes = [8, 64], strides = [1, 1]} : vector<64x64xf32> to vector<8x64xf32>
    %18 = vector.extract_strided_slice %15 {offsets = [40, 0], sizes = [8, 64], strides = [1, 1]} : vector<64x64xf32> to vector<8x64xf32>
    %19 = vector.extract_strided_slice %15 {offsets = [32, 0], sizes = [8, 64], strides = [1, 1]} : vector<64x64xf32> to vector<8x64xf32>
    %20 = vector.extract_strided_slice %15 {offsets = [24, 0], sizes = [8, 64], strides = [1, 1]} : vector<64x64xf32> to vector<8x64xf32>
    %21 = vector.extract_strided_slice %15 {offsets = [16, 0], sizes = [8, 64], strides = [1, 1]} : vector<64x64xf32> to vector<8x64xf32>
    %22 = vector.extract_strided_slice %15 {offsets = [8, 0], sizes = [8, 64], strides = [1, 1]} : vector<64x64xf32> to vector<8x64xf32>
    %23 = vector.extract_strided_slice %15 {offsets = [0, 0], sizes = [8, 64], strides = [1, 1]} : vector<64x64xf32> to vector<8x64xf32>
    %24 = tpu.concatenate %16, %17, %18, %19, %20, %21, %22, %23 in 0 : vector<8x64xf32>, vector<8x64xf32>, vector<8x64xf32>, vector<8x64xf32>, vector<8x64xf32>, vector<8x64xf32>, vector<8x64xf32>, vector<8x64xf32> -> vector<64x64xf32>
    %25 = arith.select %2, %15, %24 : vector<64x64xi1>, vector<64x64xf32>
    %cst_6 = arith.constant 0.000000e+00 : f32
    %26 = vector.broadcast %cst_6 : f32 to vector<8x64xf32>
    %27 = vector.extract_strided_slice %25 {offsets = [0, 0], sizes = [8, 64], strides = [1, 1]} : vector<64x64xf32> to vector<8x64xf32>
    %28 = arith.truncf %26 : vector<8x64xf32> to vector<8x64xbf16>
    %cst_7 = arith.constant dense<0.000000e+00> : vector<8x64xf32>
    %29 = tpu.matmul %28, %11, %cst_7 {dimension_numbers = #tpu.dot_dimension_numbers<[1], [0], [0], [1], [0, 0, 1, 1], [], []>} : vector<8x64xbf16>, vector<64x64xbf16>, vector<8x64xf32> -> vector<8x64xf32>
    %30 = arith.addf %27, %29 : vector<8x64xf32>
    %31 = math.tanh %30 : vector<8x64xf32>
    %32 = vector.extract_strided_slice %25 {offsets = [8, 0], sizes = [8, 64], strides = [1, 1]} : vector<64x64xf32> to vector<8x64xf32>
    %33 = arith.truncf %31 : vector<8x64xf32> to vector<8x64xbf16>
    %cst_8 = arith.constant dense<0.000000e+00> : vector<8x64xf32>
    %34 = tpu.matmul %33, %11, %cst_8 {dimension_numbers = #tpu.dot_dimension_numbers<[1], [0], [0], [1], [0, 0, 1, 1], [], []>} : vector<8x64xbf16>, vector<64x64xbf16>, vector<8x64xf32> -> vector<8x64xf32>
    %35 = arith.addf %32, %34 : vector<8x64xf32>
    %36 = math.tanh %35 : vector<8x64xf32>
    %37 = vector.extract_strided_slice %25 {offsets = [16, 0], sizes = [8, 64], strides = [1, 1]} : vector<64x64xf32> to vector<8x64xf32>
    %38 = arith.truncf %36 : vector<8x64xf32> to vector<8x64xbf16>
    %cst_9 = arith.constant dense<0.000000e+00> : vector<8x64xf32>
    %39 = tpu.matmul %38, %11, %cst_9 {dimension_numbers = #tpu.dot_dimension_numbers<[1], [0], [0], [1], [0, 0, 1, 1], [], []>} : vector<8x64xbf16>, vector<64x64xbf16>, vector<8x64xf32> -> vector<8x64xf32>
    %40 = arith.addf %37, %39 : vector<8x64xf32>
    %41 = math.tanh %40 : vector<8x64xf32>
    %42 = vector.extract_strided_slice %25 {offsets = [24, 0], sizes = [8, 64], strides = [1, 1]} : vector<64x64xf32> to vector<8x64xf32>
    %43 = arith.truncf %41 : vector<8x64xf32> to vector<8x64xbf16>
    %cst_10 = arith.constant dense<0.000000e+00> : vector<8x64xf32>
    %44 = tpu.matmul %43, %11, %cst_10 {dimension_numbers = #tpu.dot_dimension_numbers<[1], [0], [0], [1], [0, 0, 1, 1], [], []>} : vector<8x64xbf16>, vector<64x64xbf16>, vector<8x64xf32> -> vector<8x64xf32>
    %45 = arith.addf %42, %44 : vector<8x64xf32>
    %46 = math.tanh %45 : vector<8x64xf32>
    %47 = vector.extract_strided_slice %25 {offsets = [32, 0], sizes = [8, 64], strides = [1, 1]} : vector<64x64xf32> to vector<8x64xf32>
    %48 = arith.truncf %46 : vector<8x64xf32> to vector<8x64xbf16>
    %cst_11 = arith.constant dense<0.000000e+00> : vector<8x64xf32>
    %49 = tpu.matmul %48, %11, %cst_11 {dimension_numbers = #tpu.dot_dimension_numbers<[1], [0], [0], [1], [0, 0, 1, 1], [], []>} : vector<8x64xbf16>, vector<64x64xbf16>, vector<8x64xf32> -> vector<8x64xf32>
    %50 = arith.addf %47, %49 : vector<8x64xf32>
    %51 = math.tanh %50 : vector<8x64xf32>
    %52 = vector.extract_strided_slice %25 {offsets = [40, 0], sizes = [8, 64], strides = [1, 1]} : vector<64x64xf32> to vector<8x64xf32>
    %53 = arith.truncf %51 : vector<8x64xf32> to vector<8x64xbf16>
    %cst_12 = arith.constant dense<0.000000e+00> : vector<8x64xf32>
    %54 = tpu.matmul %53, %11, %cst_12 {dimension_numbers = #tpu.dot_dimension_numbers<[1], [0], [0], [1], [0, 0, 1, 1], [], []>} : vector<8x64xbf16>, vector<64x64xbf16>, vector<8x64xf32> -> vector<8x64xf32>
    %55 = arith.addf %52, %54 : vector<8x64xf32>
    %56 = math.tanh %55 : vector<8x64xf32>
    %57 = vector.extract_strided_slice %25 {offsets = [48, 0], sizes = [8, 64], strides = [1, 1]} : vector<64x64xf32> to vector<8x64xf32>
    %58 = arith.truncf %56 : vector<8x64xf32> to vector<8x64xbf16>
    %cst_13 = arith.constant dense<0.000000e+00> : vector<8x64xf32>
    %59 = tpu.matmul %58, %11, %cst_13 {dimension_numbers = #tpu.dot_dimension_numbers<[1], [0], [0], [1], [0, 0, 1, 1], [], []>} : vector<8x64xbf16>, vector<64x64xbf16>, vector<8x64xf32> -> vector<8x64xf32>
    %60 = arith.addf %57, %59 : vector<8x64xf32>
    %61 = math.tanh %60 : vector<8x64xf32>
    %62 = vector.extract_strided_slice %25 {offsets = [56, 0], sizes = [8, 64], strides = [1, 1]} : vector<64x64xf32> to vector<8x64xf32>
    %63 = arith.truncf %61 : vector<8x64xf32> to vector<8x64xbf16>
    %cst_14 = arith.constant dense<0.000000e+00> : vector<8x64xf32>
    %64 = tpu.matmul %63, %11, %cst_14 {dimension_numbers = #tpu.dot_dimension_numbers<[1], [0], [0], [1], [0, 0, 1, 1], [], []>} : vector<8x64xbf16>, vector<64x64xbf16>, vector<8x64xf32> -> vector<8x64xf32>
    %65 = arith.addf %62, %64 : vector<8x64xf32>
    %66 = math.tanh %65 : vector<8x64xf32>
    %67 = tpu.concatenate %31, %36, %41, %46, %51, %56, %61, %66 in 0 : vector<8x64xf32>, vector<8x64xf32>, vector<8x64xf32>, vector<8x64xf32>, vector<8x64xf32>, vector<8x64xf32>, vector<8x64xf32>, vector<8x64xf32> -> vector<64x64xf32>
    %68 = tpu.concatenate %66, %61, %56, %51, %46, %41, %36, %31 in 0 : vector<8x64xf32>, vector<8x64xf32>, vector<8x64xf32>, vector<8x64xf32>, vector<8x64xf32>, vector<8x64xf32>, vector<8x64xf32>, vector<8x64xf32> -> vector<64x64xf32>
    %69 = arith.select %2, %67, %68 : vector<64x64xi1>, vector<64x64xf32>
    %70 = arith.truncf %69 : vector<64x64xf32> to vector<64x64xbf16>
    %c8 = arith.constant 8 : index
    %c0_15 = arith.constant 0 : index
    %71 = vector.load %arg1[%c8, %c0_15] : memref<328x128xf32, #tpu.memory_space<vmem>>, vector<64x64xf32>
    %72 = arith.truncf %71 : vector<64x64xf32> to vector<64x64xbf16>
    %c136 = arith.constant 136 : index
    %c0_16 = arith.constant 0 : index
    %73 = vector.load %arg1[%c136, %c0_16] : memref<328x128xf32, #tpu.memory_space<vmem>>, vector<64x64xf32>
    %74 = arith.truncf %73 : vector<64x64xf32> to vector<64x64xbf16>
    %c304 = arith.constant 304 : index
    %c0_17 = arith.constant 0 : index
    %75 = vector.load %arg1[%c304, %c0_17] : memref<328x128xf32, #tpu.memory_space<vmem>>, vector<1x64xf32>
    %cst_18 = arith.constant dense<0.000000e+00> : vector<64x64xf32>
    %76 = tpu.matmul %70, %72, %cst_18 {dimension_numbers = #tpu.dot_dimension_numbers<[1], [0], [0], [1], [0, 0, 1, 1], [], []>} : vector<64x64xbf16>, vector<64x64xbf16>, vector<64x64xf32> -> vector<64x64xf32>
    %77 = vector.broadcast %75 : vector<1x64xf32> to vector<64x64xf32>
    %78 = arith.addf %76, %77 : vector<64x64xf32>
    %79 = vector.extract_strided_slice %78 {offsets = [56, 0], sizes = [8, 64], strides = [1, 1]} : vector<64x64xf32> to vector<8x64xf32>
    %80 = vector.extract_strided_slice %78 {offsets = [48, 0], sizes = [8, 64], strides = [1, 1]} : vector<64x64xf32> to vector<8x64xf32>
    %81 = vector.extract_strided_slice %78 {offsets = [40, 0], sizes = [8, 64], strides = [1, 1]} : vector<64x64xf32> to vector<8x64xf32>
    %82 = vector.extract_strided_slice %78 {offsets = [32, 0], sizes = [8, 64], strides = [1, 1]} : vector<64x64xf32> to vector<8x64xf32>
    %83 = vector.extract_strided_slice %78 {offsets = [24, 0], sizes = [8, 64], strides = [1, 1]} : vector<64x64xf32> to vector<8x64xf32>
    %84 = vector.extract_strided_slice %78 {offsets = [16, 0], sizes = [8, 64], strides = [1, 1]} : vector<64x64xf32> to vector<8x64xf32>
    %85 = vector.extract_strided_slice %78 {offsets = [8, 0], sizes = [8, 64], strides = [1, 1]} : vector<64x64xf32> to vector<8x64xf32>
    %86 = vector.extract_strided_slice %78 {offsets = [0, 0], sizes = [8, 64], strides = [1, 1]} : vector<64x64xf32> to vector<8x64xf32>
    %87 = tpu.concatenate %79, %80, %81, %82, %83, %84, %85, %86 in 0 : vector<8x64xf32>, vector<8x64xf32>, vector<8x64xf32>, vector<8x64xf32>, vector<8x64xf32>, vector<8x64xf32>, vector<8x64xf32>, vector<8x64xf32> -> vector<64x64xf32>
    %88 = arith.select %2, %78, %87 : vector<64x64xi1>, vector<64x64xf32>
    %cst_19 = arith.constant 0.000000e+00 : f32
    %89 = vector.broadcast %cst_19 : f32 to vector<8x64xf32>
    %90 = vector.extract_strided_slice %88 {offsets = [0, 0], sizes = [8, 64], strides = [1, 1]} : vector<64x64xf32> to vector<8x64xf32>
    %91 = arith.truncf %89 : vector<8x64xf32> to vector<8x64xbf16>
    %cst_20 = arith.constant dense<0.000000e+00> : vector<8x64xf32>
    %92 = tpu.matmul %91, %74, %cst_20 {dimension_numbers = #tpu.dot_dimension_numbers<[1], [0], [0], [1], [0, 0, 1, 1], [], []>} : vector<8x64xbf16>, vector<64x64xbf16>, vector<8x64xf32> -> vector<8x64xf32>
    %93 = arith.addf %90, %92 : vector<8x64xf32>
    %94 = math.tanh %93 : vector<8x64xf32>
    %95 = vector.extract_strided_slice %88 {offsets = [8, 0], sizes = [8, 64], strides = [1, 1]} : vector<64x64xf32> to vector<8x64xf32>
    %96 = arith.truncf %94 : vector<8x64xf32> to vector<8x64xbf16>
    %cst_21 = arith.constant dense<0.000000e+00> : vector<8x64xf32>
    %97 = tpu.matmul %96, %74, %cst_21 {dimension_numbers = #tpu.dot_dimension_numbers<[1], [0], [0], [1], [0, 0, 1, 1], [], []>} : vector<8x64xbf16>, vector<64x64xbf16>, vector<8x64xf32> -> vector<8x64xf32>
    %98 = arith.addf %95, %97 : vector<8x64xf32>
    %99 = math.tanh %98 : vector<8x64xf32>
    %100 = vector.extract_strided_slice %88 {offsets = [16, 0], sizes = [8, 64], strides = [1, 1]} : vector<64x64xf32> to vector<8x64xf32>
    %101 = arith.truncf %99 : vector<8x64xf32> to vector<8x64xbf16>
    %cst_22 = arith.constant dense<0.000000e+00> : vector<8x64xf32>
    %102 = tpu.matmul %101, %74, %cst_22 {dimension_numbers = #tpu.dot_dimension_numbers<[1], [0], [0], [1], [0, 0, 1, 1], [], []>} : vector<8x64xbf16>, vector<64x64xbf16>, vector<8x64xf32> -> vector<8x64xf32>
    %103 = arith.addf %100, %102 : vector<8x64xf32>
    %104 = math.tanh %103 : vector<8x64xf32>
    %105 = vector.extract_strided_slice %88 {offsets = [24, 0], sizes = [8, 64], strides = [1, 1]} : vector<64x64xf32> to vector<8x64xf32>
    %106 = arith.truncf %104 : vector<8x64xf32> to vector<8x64xbf16>
    %cst_23 = arith.constant dense<0.000000e+00> : vector<8x64xf32>
    %107 = tpu.matmul %106, %74, %cst_23 {dimension_numbers = #tpu.dot_dimension_numbers<[1], [0], [0], [1], [0, 0, 1, 1], [], []>} : vector<8x64xbf16>, vector<64x64xbf16>, vector<8x64xf32> -> vector<8x64xf32>
    %108 = arith.addf %105, %107 : vector<8x64xf32>
    %109 = math.tanh %108 : vector<8x64xf32>
    %110 = vector.extract_strided_slice %88 {offsets = [32, 0], sizes = [8, 64], strides = [1, 1]} : vector<64x64xf32> to vector<8x64xf32>
    %111 = arith.truncf %109 : vector<8x64xf32> to vector<8x64xbf16>
    %cst_24 = arith.constant dense<0.000000e+00> : vector<8x64xf32>
    %112 = tpu.matmul %111, %74, %cst_24 {dimension_numbers = #tpu.dot_dimension_numbers<[1], [0], [0], [1], [0, 0, 1, 1], [], []>} : vector<8x64xbf16>, vector<64x64xbf16>, vector<8x64xf32> -> vector<8x64xf32>
    %113 = arith.addf %110, %112 : vector<8x64xf32>
    %114 = math.tanh %113 : vector<8x64xf32>
    %115 = vector.extract_strided_slice %88 {offsets = [40, 0], sizes = [8, 64], strides = [1, 1]} : vector<64x64xf32> to vector<8x64xf32>
    %116 = arith.truncf %114 : vector<8x64xf32> to vector<8x64xbf16>
    %cst_25 = arith.constant dense<0.000000e+00> : vector<8x64xf32>
    %117 = tpu.matmul %116, %74, %cst_25 {dimension_numbers = #tpu.dot_dimension_numbers<[1], [0], [0], [1], [0, 0, 1, 1], [], []>} : vector<8x64xbf16>, vector<64x64xbf16>, vector<8x64xf32> -> vector<8x64xf32>
    %118 = arith.addf %115, %117 : vector<8x64xf32>
    %119 = math.tanh %118 : vector<8x64xf32>
    %120 = vector.extract_strided_slice %88 {offsets = [48, 0], sizes = [8, 64], strides = [1, 1]} : vector<64x64xf32> to vector<8x64xf32>
    %121 = arith.truncf %119 : vector<8x64xf32> to vector<8x64xbf16>
    %cst_26 = arith.constant dense<0.000000e+00> : vector<8x64xf32>
    %122 = tpu.matmul %121, %74, %cst_26 {dimension_numbers = #tpu.dot_dimension_numbers<[1], [0], [0], [1], [0, 0, 1, 1], [], []>} : vector<8x64xbf16>, vector<64x64xbf16>, vector<8x64xf32> -> vector<8x64xf32>
    %123 = arith.addf %120, %122 : vector<8x64xf32>
    %124 = math.tanh %123 : vector<8x64xf32>
    %125 = vector.extract_strided_slice %88 {offsets = [56, 0], sizes = [8, 64], strides = [1, 1]} : vector<64x64xf32> to vector<8x64xf32>
    %126 = arith.truncf %124 : vector<8x64xf32> to vector<8x64xbf16>
    %cst_27 = arith.constant dense<0.000000e+00> : vector<8x64xf32>
    %127 = tpu.matmul %126, %74, %cst_27 {dimension_numbers = #tpu.dot_dimension_numbers<[1], [0], [0], [1], [0, 0, 1, 1], [], []>} : vector<8x64xbf16>, vector<64x64xbf16>, vector<8x64xf32> -> vector<8x64xf32>
    %128 = arith.addf %125, %127 : vector<8x64xf32>
    %129 = math.tanh %128 : vector<8x64xf32>
    %130 = arith.select %5, %129, %94 : vector<8x64xi1>, vector<8x64xf32>
    %c200 = arith.constant 200 : index
    %c0_28 = arith.constant 0 : index
    %131 = vector.load %arg1[%c200, %c0_28] : memref<328x128xf32, #tpu.memory_space<vmem>>, vector<64x32xf32>
    %132 = arith.truncf %131 : vector<64x32xf32> to vector<64x32xbf16>
    %c312 = arith.constant 312 : index
    %c0_29 = arith.constant 0 : index
    %133 = vector.load %arg1[%c312, %c0_29] : memref<328x128xf32, #tpu.memory_space<vmem>>, vector<1x32xf32>
    %c264 = arith.constant 264 : index
    %c0_30 = arith.constant 0 : index
    %134 = vector.load %arg1[%c264, %c0_30] : memref<328x128xf32, #tpu.memory_space<vmem>>, vector<32x128xf32>
    %135 = arith.truncf %134 : vector<32x128xf32> to vector<32x128xbf16>
    %c320 = arith.constant 320 : index
    %c0_31 = arith.constant 0 : index
    %136 = vector.load %arg1[%c320, %c0_31] : memref<328x128xf32, #tpu.memory_space<vmem>>, vector<1x128xf32>
    %137 = arith.truncf %130 : vector<8x64xf32> to vector<8x64xbf16>
    %cst_32 = arith.constant dense<0.000000e+00> : vector<8x32xf32>
    %138 = tpu.matmul %137, %132, %cst_32 {dimension_numbers = #tpu.dot_dimension_numbers<[1], [0], [0], [1], [0, 0, 1, 1], [], []>} : vector<8x64xbf16>, vector<64x32xbf16>, vector<8x32xf32> -> vector<8x32xf32>
    %139 = vector.broadcast %133 : vector<1x32xf32> to vector<8x32xf32>
    %140 = arith.addf %138, %139 : vector<8x32xf32>
    %cst_33 = arith.constant 0.000000e+00 : f32
    %141 = vector.broadcast %cst_33 : f32 to vector<8x32xf32>
    %142 = arith.maximumf %140, %141 : vector<8x32xf32>
    %143 = arith.truncf %142 : vector<8x32xf32> to vector<8x32xbf16>
    %cst_34 = arith.constant dense<0.000000e+00> : vector<8x128xf32>
    %144 = tpu.matmul %143, %135, %cst_34 {dimension_numbers = #tpu.dot_dimension_numbers<[1], [0], [0], [1], [0, 0, 1, 1], [], []>} : vector<8x32xbf16>, vector<32x128xbf16>, vector<8x128xf32> -> vector<8x128xf32>
    %145 = vector.broadcast %136 : vector<1x128xf32> to vector<8x128xf32>
    %146 = arith.addf %144, %145 : vector<8x128xf32>
    %c0_35 = arith.constant 0 : index
    %c0_36 = arith.constant 0 : index
    %147 = vector.load %arg2[%c0_35, %c0_36] : memref<8x128xf32, #tpu.memory_space<vmem>>, vector<8x128xf32>
    tpu.vector_store %arg2[%c0_35, %c0_36], %146 {strides = array<i32>} : memref<8x128xf32, #tpu.memory_space<vmem>>, vector<8x128xf32>,
    return
  }
}

</mosaic_0001>

<llo_original>
// kernel: tpu_custom_call.1
$region0: #{tpu_custom_call.1}
  #allocation0 [shape = 'u32[]', space=smem, size = 0x4, offset = 0x4, fixed_abs, tag = 'smem constant byte address 0x4 - core index']
  #allocation1 [shape = 'u32[144,128]{1,0:T(1,128)}', space=vmem, size = 0x12000, scoped, tag = 'internal scratch']
  %s0 = inlined_call_operand.vmem [shape: f32[64,8], index: 0, kind: input, shape index: {}]
  %s1 = inlined_call_operand.hbm [shape: f32[328,128], index: 1, kind: input, shape index: {}]
  %s2 = inlined_call_operand.hbm [shape: f32[8,128], index: 2, kind: output, shape index: {}]
  %s3 = sld [smem:[#allocation0]]
  $region22: #{tpu_custom_call.1} parent=0
    _
  %s5 = ssub.s32 1, %s3
  %s6 = scalar_select 0, %s5, %s3
  $region1: #{tpu_custom_call.1} parent=0
    #allocation2 [shape = 'u8[167936]{0}', space=vmem, size = 0x29000, scoped, tag = 'input window, operand 1, single buffered']
    #allocation3 [shape = 's32[1]{0}', space=sflag, size = 0x4, scoped, tag = 'scoped memory for tpu_custom_call.1']
    #allocation4 [shape = 's32[1]{0}', space=sflag, size = 0x4, scoped, tag = 'scoped memory for tpu_custom_call.1']
    #allocation5 [shape = 'u8[4096]{0}', space=vmem, size = 0x1000, scoped, tag = 'output window, operand 0, single buffered']
    %7 = vsyncpa [#allocation3], 0
    %8 = vsyncpa [#allocation4], 0
    // Predicated region
    $region2: #{tpu_custom_call.1} parent=1 // pred_check
      _
    $region3: #{tpu_custom_call.1} parent=1 // pred_check_branch
      %10 = sbr.rel (0) target = $region5
    $region4: #{tpu_custom_call.1} parent=1 // pred_region
      _
    $region5: #{tpu_custom_call.1} parent=1 // pred_fallthru
      _
    // Predicated region
    $region6: #{tpu_custom_call.1} parent=1 // pred_check
      _
    $region7: #{tpu_custom_call.1} parent=1 // pred_check_branch
      %12 = sbr.rel (0) target = $region9
    $region8: #{tpu_custom_call.1} parent=1 // pred_region
      %s14 = ssub.s32 5248, 5248
      %15 = vsyncadd [#allocation3], %s14
      %s16 = sshll.u32 [#allocation2], 4
      %s17 = int_to_ptr.vmem [resolvable:$true] %s16
      %22 = dma.hbm_to_vmem [thread:$0]  %s1, 5248, %s17, [#allocation3], 128, 128, 8
    $region9: #{tpu_custom_call.1} parent=1 // pred_fallthru
      _
    // Predicated region
    $region10: #{tpu_custom_call.1} parent=1 // pred_check
      _
    $region11: #{tpu_custom_call.1} parent=1 // pred_check_branch
      %24 = sbr.rel (0) target = $region13
    $region12: #{tpu_custom_call.1} parent=1 // pred_region
      %25 = dma.done [#allocation3], 5248
    $region13: #{tpu_custom_call.1} parent=1 // pred_fallthru
      _
    %v27 = vlaneseq
    %v28 = vand.u32 %v27, 127
    %vm29 = vcmp.lt.s32.totalorder %v28, 32
    %v30 = vld [vmem:[%s0] sm:$0xff]
    %v31 = vld [vmem:[%s0 + $0x8] sm:$0xff]
    %v32 = vld [vmem:[%s0 + $0x10] sm:$0xff]
    %v33 = vld [vmem:[%s0 + $0x18] sm:$0xff]
    %v34 = vld [vmem:[%s0 + $0x20] sm:$0xff]
    %v35 = vld [vmem:[%s0 + $0x28] sm:$0xff]
    %v36 = vld [vmem:[%s0 + $0x30] sm:$0xff]
    %v37 = vld [vmem:[%s0 + $0x38] sm:$0xff]
    %v38 = vpack.c.bf16 %v31, %v30
    %v39 = vpack.c.bf16 %v33, %v32
    %v40 = vpack.c.bf16 %v35, %v34
    %v41 = vpack.c.bf16 %v37, %v36
    %v42 = vld [vmem:[#allocation2] sm:$0xff]
    %v43 = vpack.c.bf16 %v42, %v42
    %v44 = vld [vmem:[#allocation2 + $0x48] sm:$0xff]
    %v45 = vld [vmem:[#allocation2 + $0x50] sm:$0xff]
    %v46 = vld [vmem:[#allocation2 + $0x58] sm:$0xff]
    %v47 = vld [vmem:[#allocation2 + $0x60] sm:$0xff]
    %v48 = vld [vmem:[#allocation2 + $0x68] sm:$0xff]
    %v49 = vld [vmem:[#allocation2 + $0x70] sm:$0xff]
    %v50 = vld [vmem:[#allocation2 + $0x78] sm:$0xff]
    %v51 = vld [vmem:[#allocation2 + $0x80] sm:$0xff]
    %v52 = vpack.c.bf16 %v45, %v44
    %v53 = vpack.c.bf16 %v47, %v46
    %v54 = vpack.c.bf16 %v49, %v48
    %v55 = vpack.c.bf16 %v51, %v50
    %v56 = vld [vmem:[#allocation2 + $0x128] sm:$0x1]
    %v57 = vlaneseq
    %v58 = vshrl.u32 %v57, 7
    %v59 = vsub.s32 0, %v58
    %v60 = vrot.slane %v56, %v59
    %vm61 = vcmask 64512
    %v63 = vsel %vm61, %v38, 0
    %v66 = vsel %vm61, %v39, 0
    %v69 = vsel %vm61, %v40, 0
    %v72 = vsel %vm61, %v41, 0
    %vm74 = vcmask 1043456
    %v76 = vsel %vm74, %v43, 0
    %78 = vmatprep.subr.bf16.mxu0 0
    %79 = vmatpush1.bf16.msra.mxu0 %v76
    %80 = vmatprep.subr.bf16.mxu0 0
    %81 = vmatpush1.bf16.msra.mxu0 0
    %82 = vmatprep.subr.bf16.mxu0 0
    %83 = vmatpush1.bf16.msra.mxu0 0
    %84 = vmatprep.subr.bf16.mxu0 0
    %85 = vmatpush1.bf16.msra.mxu0 0
    %86 = vmatprep.subr.bf16.mxu0 0
    %87 = vmatpush1.bf16.msra.mxu0 0
    %88 = vmatprep.subr.bf16.mxu0 0
    %89 = vmatpush1.bf16.msra.mxu0 0
    %90 = vmatprep.subr.bf16.mxu0 0
    %91 = vmatpush1.bf16.msra.mxu0 0
    %92 = vmatprep.subr.bf16.mxu0 0
    %93 = vmatpush1.bf16.msra.mxu0 0
    %94 = vmatprep.subr.bf16.mxu0 0
    %95 = vmatpush1.bf16.msra.mxu0 0
    %96 = vmatprep.subr.bf16.mxu0 0
    %97 = vmatpush1.bf16.msra.mxu0 0
    %98 = vmatprep.subr.bf16.mxu0 0
    %99 = vmatpush1.bf16.msra.mxu0 0
    %100 = vmatprep.subr.bf16.mxu0 0
    %101 = vmatpush1.bf16.msra.mxu0 0
    %102 = vmatprep.subr.bf16.mxu0 0
    %103 = vmatpush1.bf16.msra.mxu0 0
    %104 = vmatprep.subr.bf16.mxu0 0
    %105 = vmatpush1.bf16.msra.mxu0 0
    %106 = vmatprep.subr.bf16.mxu0 0
    %107 = vmatpush1.bf16.msra.mxu0 0
    %108 = vmatprep.subr.bf16.mxu0 0
    %109 = vmatpush1.bf16.msra.mxu0 0
    %110 = vmatprep.mubr.bf16.mxu0 0
    %111 = vmatmul.mubr.bf16.gmra.mrb[0].mxu0 %v63
    %v112 = vpop.f32.mrb[0].mxu0
    %v113 = vadd.f32 %v60, %v112
    %v114 = vpop.f32.mrb[0].mxu0
    %v115 = vpop.f32.mrb[0].mxu0
    %v116 = vadd.f32 %v60, %v115
    %v117 = vpop.f32.mrb[0].mxu0
    %118 = vmatprep.mubr.bf16.mxu0 0
    %119 = vmatmul.mubr.bf16.gmra.mrb[0].mxu0 %v66
    %v120 = vpop.f32.mrb[0].mxu0
    %v121 = vadd.f32 %v60, %v120
    %v122 = vpop.f32.mrb[0].mxu0
    %v123 = vpop.f32.mrb[0].mxu0
    %v124 = vadd.f32 %v60, %v123
    %v125 = vpop.f32.mrb[0].mxu0
    %126 = vmatprep.mubr.bf16.mxu0 0
    %127 = vmatmul.mubr.bf16.gmra.mrb[0].mxu0 %v69
    %v128 = vpop.f32.mrb[0].mxu0
    %v129 = vadd.f32 %v60, %v128
    %v130 = vpop.f32.mrb[0].mxu0
    %v131 = vpop.f32.mrb[0].mxu0
    %v132 = vadd.f32 %v60, %v131
    %v133 = vpop.f32.mrb[0].mxu0
    %134 = vmatprep.mubr.bf16.mxu0 0
    %135 = vmatmul.mubr.bf16.gmra.mrb[0].mxu0 %v72
    %v136 = vpop.f32.mrb[0].mxu0
    %v137 = vadd.f32 %v60, %v136
    %v138 = vpop.f32.mrb[0].mxu0
    %v139 = vpop.f32.mrb[0].mxu0
    %v140 = vadd.f32 %v60, %v139
    %v141 = vpop.f32.mrb[0].mxu0
    %142 = vdwg.mxu0
    %v143 = vsel %vm29, %v113, %v140
    %v144 = vsel %vm29, %v116, %v137
    %v145 = vsel %vm29, %v121, %v132
    %v146 = vsel %vm29, %v124, %v129
    %v147 = vsel %vm29, %v129, %v124
    %v148 = vsel %vm29, %v132, %v121
    %v149 = vsel %vm29, %v137, %v116
    %v150 = vsel %vm29, %v140, %v113
    %vm151 = vcmask 523264
    %v153 = vsel %vm151, 0, 0
    %155 = vmatprep.subr.bf16.mxu0 0
    %156 = vmatpush1.bf16.msra.mxu0 %v52
    %157 = vmatprep.subr.bf16.mxu0 0
    %158 = vmatpush1.bf16.msra.mxu0 %v53
    %159 = vmatprep.subr.bf16.mxu0 0
    %160 = vmatpush1.bf16.msra.mxu0 %v54
    %161 = vmatprep.subr.bf16.mxu0 0
    %162 = vmatpush1.bf16.msra.mxu0 %v55
    %163 = vmatprep.subr.bf16.mxu0 0
    %164 = vmatpush1.bf16.msra.mxu0 0
    %165 = vmatprep.subr.bf16.mxu0 0
    %166 = vmatpush1.bf16.msra.mxu0 0
    %167 = vmatprep.subr.bf16.mxu0 0
    %168 = vmatpush1.bf16.msra.mxu0 0
    %169 = vmatprep.subr.bf16.mxu0 0
    %170 = vmatpush1.bf16.msra.mxu0 0
    %171 = vmatprep.subr.bf16.mxu0 0
    %172 = vmatpush1.bf16.msra.mxu0 0
    %173 = vmatprep.subr.bf16.mxu0 0
    %174 = vmatpush1.bf16.msra.mxu0 0
    %175 = vmatprep.subr.bf16.mxu0 0
    %176 = vmatpush1.bf16.msra.mxu0 0
    %177 = vmatprep.subr.bf16.mxu0 0
    %178 = vmatpush1.bf16.msra.mxu0 0
    %179 = vmatprep.subr.bf16.mxu0 0
    %180 = vmatpush1.bf16.msra.mxu0 0
    %181 = vmatprep.subr.bf16.mxu0 0
    %182 = vmatpush1.bf16.msra.mxu0 0
    %183 = vmatprep.subr.bf16.mxu0 0
    %184 = vmatpush1.bf16.msra.mxu0 0
    %185 = vmatprep.subr.bf16.mxu0 0
    %186 = vmatpush1.bf16.msra.mxu0 0
    %187 = vmatprep.mubr.bf16.mxu0 0
    %188 = vmatmul.mubr.bf16.gmra.mrb[0].mxu0 %v153
    %v189 = vpop.f32.mrb[0].mxu0
    %v190 = vadd.f32 0.0, %v189
    %v191 = vpop.f32.mrb[0].mxu0
    %v192 = vpop.f32.mrb[0].mxu0
    %v193 = vpop.f32.mrb[0].mxu0
    %194 = vdwg.mxu0
    %v195 = vadd.f32 %v143, %v190
    %v196 = vtanh.pop %v195
    %v197 = vpack.c.bf16 %v196, %v196
    %v199 = vsel %vm151, %v197, 0
    %201 = vmatprep.subr.bf16.mxu0 0
    %202 = vmatpush1.bf16.msra.mxu0 %v52
    %203 = vmatprep.subr.bf16.mxu0 0
    %204 = vmatpush1.bf16.msra.mxu0 %v53
    %205 = vmatprep.subr.bf16.mxu0 0
    %206 = vmatpush1.bf16.msra.mxu0 %v54
    %207 = vmatprep.subr.bf16.mxu0 0
    %208 = vmatpush1.bf16.msra.mxu0 %v55
    %209 = vmatprep.subr.bf16.mxu0 0
    %210 = vmatpush1.bf16.msra.mxu0 0
    %211 = vmatprep.subr.bf16.mxu0 0
    %212 = vmatpush1.bf16.msra.mxu0 0
    %213 = vmatprep.subr.bf16.mxu0 0
    %214 = vmatpush1.bf16.msra.mxu0 0
    %215 = vmatprep.subr.bf16.mxu0 0
    %216 = vmatpush1.bf16.msra.mxu0 0
    %217 = vmatprep.subr.bf16.mxu0 0
    %218 = vmatpush1.bf16.msra.mxu0 0
    %219 = vmatprep.subr.bf16.mxu0 0
    %220 = vmatpush1.bf16.msra.mxu0 0
    %221 = vmatprep.subr.bf16.mxu0 0
    %222 = vmatpush1.bf16.msra.mxu0 0
    %223 = vmatprep.subr.bf16.mxu0 0
    %224 = vmatpush1.bf16.msra.mxu0 0
    %225 = vmatprep.subr.bf16.mxu0 0
    %226 = vmatpush1.bf16.msra.mxu0 0
    %227 = vmatprep.subr.bf16.mxu0 0
    %228 = vmatpush1.bf16.msra.mxu0 0
    %229 = vmatprep.subr.bf16.mxu0 0
    %230 = vmatpush1.bf16.msra.mxu0 0
    %231 = vmatprep.subr.bf16.mxu0 0
    %232 = vmatpush1.bf16.msra.mxu0 0
    %233 = vmatprep.mubr.bf16.mxu0 0
    %234 = vmatmul.mubr.bf16.gmra.mrb[0].mxu0 %v199
    %v235 = vpop.f32.mrb[0].mxu0
    %v236 = vadd.f32 0.0, %v235
    %v237 = vpop.f32.mrb[0].mxu0
    %v238 = vpop.f32.mrb[0].mxu0
    %v239 = vpop.f32.mrb[0].mxu0
    %240 = vdwg.mxu0
    %v241 = vadd.f32 %v144, %v236
    %v242 = vtanh.pop %v241
    %v243 = vpack.c.bf16 %v242, %v242
    %v245 = vsel %vm151, %v243, 0
    %247 = vmatprep.subr.bf16.mxu0 0
    %248 = vmatpush1.bf16.msra.mxu0 %v52
    %249 = vmatprep.subr.bf16.mxu0 0
    %250 = vmatpush1.bf16.msra.mxu0 %v53
    %251 = vmatprep.subr.bf16.mxu0 0
    %252 = vmatpush1.bf16.msra.mxu0 %v54
    %253 = vmatprep.subr.bf16.mxu0 0
    %254 = vmatpush1.bf16.msra.mxu0 %v55
    %255 = vmatprep.subr.bf16.mxu0 0
    %256 = vmatpush1.bf16.msra.mxu0 0
    %257 = vmatprep.subr.bf16.mxu0 0
    %258 = vmatpush1.bf16.msra.mxu0 0
    %259 = vmatprep.subr.bf16.mxu0 0
    %260 = vmatpush1.bf16.msra.mxu0 0
    %261 = vmatprep.subr.bf16.mxu0 0
    %262 = vmatpush1.bf16.msra.mxu0 0
    %263 = vmatprep.subr.bf16.mxu0 0
    %264 = vmatpush1.bf16.msra.mxu0 0
    %265 = vmatprep.subr.bf16.mxu0 0
    %266 = vmatpush1.bf16.msra.mxu0 0
    %267 = vmatprep.subr.bf16.mxu0 0
    %268 = vmatpush1.bf16.msra.mxu0 0
    %269 = vmatprep.subr.bf16.mxu0 0
    %270 = vmatpush1.bf16.msra.mxu0 0
    %271 = vmatprep.subr.bf16.mxu0 0
    %272 = vmatpush1.bf16.msra.mxu0 0
    %273 = vmatprep.subr.bf16.mxu0 0
    %274 = vmatpush1.bf16.msra.mxu0 0
    %275 = vmatprep.subr.bf16.mxu0 0
    %276 = vmatpush1.bf16.msra.mxu0 0
    %277 = vmatprep.subr.bf16.mxu0 0
    %278 = vmatpush1.bf16.msra.mxu0 0
    %279 = vmatprep.mubr.bf16.mxu0 0
    %280 = vmatmul.mubr.bf16.gmra.mrb[0].mxu0 %v245
    %v281 = vpop.f32.mrb[0].mxu0
    %v282 = vadd.f32 0.0, %v281
    %v283 = vpop.f32.mrb[0].mxu0
    %v284 = vpop.f32.mrb[0].mxu0
    %v285 = vpop.f32.mrb[0].mxu0
    %286 = vdwg.mxu0
    %v287 = vadd.f32 %v145, %v282
    %v288 = vtanh.pop %v287
    %v289 = vpack.c.bf16 %v288, %v288
    %v291 = vsel %vm151, %v289, 0
    %293 = vmatprep.subr.bf16.mxu0 0
    %294 = vmatpush1.bf16.msra.mxu0 %v52
    %295 = vmatprep.subr.bf16.mxu0 0
    %296 = vmatpush1.bf16.msra.mxu0 %v53
    %297 = vmatprep.subr.bf16.mxu0 0
    %298 = vmatpush1.bf16.msra.mxu0 %v54
    %299 = vmatprep.subr.bf16.mxu0 0
    %300 = vmatpush1.bf16.msra.mxu0 %v55
    %301 = vmatprep.subr.bf16.mxu0 0
    %302 = vmatpush1.bf16.msra.mxu0 0
    %303 = vmatprep.subr.bf16.mxu0 0
    %304 = vmatpush1.bf16.msra.mxu0 0
    %305 = vmatprep.subr.bf16.mxu0 0
    %306 = vmatpush1.bf16.msra.mxu0 0
    %307 = vmatprep.subr.bf16.mxu0 0
    %308 = vmatpush1.bf16.msra.mxu0 0
    %309 = vmatprep.subr.bf16.mxu0 0
    %310 = vmatpush1.bf16.msra.mxu0 0
    %311 = vmatprep.subr.bf16.mxu0 0
    %312 = vmatpush1.bf16.msra.mxu0 0
    %313 = vmatprep.subr.bf16.mxu0 0
    %314 = vmatpush1.bf16.msra.mxu0 0
    %315 = vmatprep.subr.bf16.mxu0 0
    %316 = vmatpush1.bf16.msra.mxu0 0
    %317 = vmatprep.subr.bf16.mxu0 0
    %318 = vmatpush1.bf16.msra.mxu0 0
    %319 = vmatprep.subr.bf16.mxu0 0
    %320 = vmatpush1.bf16.msra.mxu0 0
    %321 = vmatprep.subr.bf16.mxu0 0
    %322 = vmatpush1.bf16.msra.mxu0 0
    %323 = vmatprep.subr.bf16.mxu0 0
    %324 = vmatpush1.bf16.msra.mxu0 0
    %325 = vmatprep.mubr.bf16.mxu0 0
    %326 = vmatmul.mubr.bf16.gmra.mrb[0].mxu0 %v291
    %v327 = vpop.f32.mrb[0].mxu0
    %v328 = vadd.f32 0.0, %v327
    %v329 = vpop.f32.mrb[0].mxu0
    %v330 = vpop.f32.mrb[0].mxu0
    %v331 = vpop.f32.mrb[0].mxu0
    %332 = vdwg.mxu0
    %v333 = vadd.f32 %v146, %v328
    %v334 = vtanh.pop %v333
    %v335 = vpack.c.bf16 %v334, %v334
    %v337 = vsel %vm151, %v335, 0
    %339 = vmatprep.subr.bf16.mxu0 0
    %340 = vmatpush1.bf16.msra.mxu0 %v52
    %341 = vmatprep.subr.bf16.mxu0 0
    %342 = vmatpush1.bf16.msra.mxu0 %v53
    %343 = vmatprep.subr.bf16.mxu0 0
    %344 = vmatpush1.bf16.msra.mxu0 %v54
    %345 = vmatprep.subr.bf16.mxu0 0
    %346 = vmatpush1.bf16.msra.mxu0 %v55
    %347 = vmatprep.subr.bf16.mxu0 0
    %348 = vmatpush1.bf16.msra.mxu0 0
    %349 = vmatprep.subr.bf16.mxu0 0
    %350 = vmatpush1.bf16.msra.mxu0 0
    %351 = vmatprep.subr.bf16.mxu0 0
    %352 = vmatpush1.bf16.msra.mxu0 0
    %353 = vmatprep.subr.bf16.mxu0 0
    %354 = vmatpush1.bf16.msra.mxu0 0
    %355 = vmatprep.subr.bf16.mxu0 0
    %356 = vmatpush1.bf16.msra.mxu0 0
    %357 = vmatprep.subr.bf16.mxu0 0
    %358 = vmatpush1.bf16.msra.mxu0 0
    %359 = vmatprep.subr.bf16.mxu0 0
    %360 = vmatpush1.bf16.msra.mxu0 0
    %361 = vmatprep.subr.bf16.mxu0 0
    %362 = vmatpush1.bf16.msra.mxu0 0
    %363 = vmatprep.subr.bf16.mxu0 0
    %364 = vmatpush1.bf16.msra.mxu0 0
    %365 = vmatprep.subr.bf16.mxu0 0
    %366 = vmatpush1.bf16.msra.mxu0 0
    %367 = vmatprep.subr.bf16.mxu0 0
    %368 = vmatpush1.bf16.msra.mxu0 0
    %369 = vmatprep.subr.bf16.mxu0 0
    %370 = vmatpush1.bf16.msra.mxu0 0
    %371 = vmatprep.mubr.bf16.mxu0 0
    %372 = vmatmul.mubr.bf16.gmra.mrb[0].mxu0 %v337
    %v373 = vpop.f32.mrb[0].mxu0
    %v374 = vadd.f32 0.0, %v373
    %v375 = vpop.f32.mrb[0].mxu0
    %v376 = vpop.f32.mrb[0].mxu0
    %v377 = vpop.f32.mrb[0].mxu0
    %378 = vdwg.mxu0
    %v379 = vadd.f32 %v147, %v374
    %v380 = vtanh.pop %v379
    %v381 = vpack.c.bf16 %v380, %v380
    %v383 = vsel %vm151, %v381, 0
    %385 = vmatprep.subr.bf16.mxu0 0
    %386 = vmatpush1.bf16.msra.mxu0 %v52
    %387 = vmatprep.subr.bf16.mxu0 0
    %388 = vmatpush1.bf16.msra.mxu0 %v53
    %389 = vmatprep.subr.bf16.mxu0 0
    %390 = vmatpush1.bf16.msra.mxu0 %v54
    %391 = vmatprep.subr.bf16.mxu0 0
    %392 = vmatpush1.bf16.msra.mxu0 %v55
    %393 = vmatprep.subr.bf16.mxu0 0
    %394 = vmatpush1.bf16.msra.mxu0 0
    %395 = vmatprep.subr.bf16.mxu0 0
    %396 = vmatpush1.bf16.msra.mxu0 0
    %397 = vmatprep.subr.bf16.mxu0 0
    %398 = vmatpush1.bf16.msra.mxu0 0
    %399 = vmatprep.subr.bf16.mxu0 0
    %400 = vmatpush1.bf16.msra.mxu0 0
    %401 = vmatprep.subr.bf16.mxu0 0
    %402 = vmatpush1.bf16.msra.mxu0 0
    %403 = vmatprep.subr.bf16.mxu0 0
    %404 = vmatpush1.bf16.msra.mxu0 0
    %405 = vmatprep.subr.bf16.mxu0 0
    %406 = vmatpush1.bf16.msra.mxu0 0
    %407 = vmatprep.subr.bf16.mxu0 0
    %408 = vmatpush1.bf16.msra.mxu0 0
    %409 = vmatprep.subr.bf16.mxu0 0
    %410 = vmatpush1.bf16.msra.mxu0 0
    %411 = vmatprep.subr.bf16.mxu0 0
    %412 = vmatpush1.bf16.msra.mxu0 0
    %413 = vmatprep.subr.bf16.mxu0 0
    %414 = vmatpush1.bf16.msra.mxu0 0
    %415 = vmatprep.subr.bf16.mxu0 0
    %416 = vmatpush1.bf16.msra.mxu0 0
    %417 = vmatprep.mubr.bf16.mxu0 0
    %418 = vmatmul.mubr.bf16.gmra.mrb[0].mxu0 %v383
    %v419 = vpop.f32.mrb[0].mxu0
    %v420 = vadd.f32 0.0, %v419
    %v421 = vpop.f32.mrb[0].mxu0
    %v422 = vpop.f32.mrb[0].mxu0
    %v423 = vpop.f32.mrb[0].mxu0
    %424 = vdwg.mxu0
    %v425 = vadd.f32 %v148, %v420
    %v426 = vtanh.pop %v425
    %v427 = vpack.c.bf16 %v426, %v426
    %v429 = vsel %vm151, %v427, 0
    %431 = vmatprep.subr.bf16.mxu0 0
    %432 = vmatpush1.bf16.msra.mxu0 %v52
    %433 = vmatprep.subr.bf16.mxu0 0
    %434 = vmatpush1.bf16.msra.mxu0 %v53
    %435 = vmatprep.subr.bf16.mxu0 0
    %436 = vmatpush1.bf16.msra.mxu0 %v54
    %437 = vmatprep.subr.bf16.mxu0 0
    %438 = vmatpush1.bf16.msra.mxu0 %v55
    %439 = vmatprep.subr.bf16.mxu0 0
    %440 = vmatpush1.bf16.msra.mxu0 0
    %441 = vmatprep.subr.bf16.mxu0 0
    %442 = vmatpush1.bf16.msra.mxu0 0
    %443 = vmatprep.subr.bf16.mxu0 0
    %444 = vmatpush1.bf16.msra.mxu0 0
    %445 = vmatprep.subr.bf16.mxu0 0
    %446 = vmatpush1.bf16.msra.mxu0 0
    %447 = vmatprep.subr.bf16.mxu0 0
    %448 = vmatpush1.bf16.msra.mxu0 0
    %449 = vmatprep.subr.bf16.mxu0 0
    %450 = vmatpush1.bf16.msra.mxu0 0
    %451 = vmatprep.subr.bf16.mxu0 0
    %452 = vmatpush1.bf16.msra.mxu0 0
    %453 = vmatprep.subr.bf16.mxu0 0
    %454 = vmatpush1.bf16.msra.mxu0 0
    %455 = vmatprep.subr.bf16.mxu0 0
    %456 = vmatpush1.bf16.msra.mxu0 0
    %457 = vmatprep.subr.bf16.mxu0 0
    %458 = vmatpush1.bf16.msra.mxu0 0
    %459 = vmatprep.subr.bf16.mxu0 0
    %460 = vmatpush1.bf16.msra.mxu0 0
    %461 = vmatprep.subr.bf16.mxu0 0
    %462 = vmatpush1.bf16.msra.mxu0 0
    %463 = vmatprep.mubr.bf16.mxu0 0
    %464 = vmatmul.mubr.bf16.gmra.mrb[0].mxu0 %v429
    %v465 = vpop.f32.mrb[0].mxu0
    %v466 = vadd.f32 0.0, %v465
    %v467 = vpop.f32.mrb[0].mxu0
    %v468 = vpop.f32.mrb[0].mxu0
    %v469 = vpop.f32.mrb[0].mxu0
    %470 = vdwg.mxu0
    %v471 = vadd.f32 %v149, %v466
    %v472 = vtanh.pop %v471
    %v473 = vpack.c.bf16 %v472, %v472
    %v475 = vsel %vm151, %v473, 0
    %477 = vmatprep.subr.bf16.mxu0 0
    %478 = vmatpush1.bf16.msra.mxu0 %v52
    %479 = vmatprep.subr.bf16.mxu0 0
    %480 = vmatpush1.bf16.msra.mxu0 %v53
    %481 = vmatprep.subr.bf16.mxu0 0
    %482 = vmatpush1.bf16.msra.mxu0 %v54
    %483 = vmatprep.subr.bf16.mxu0 0
    %484 = vmatpush1.bf16.msra.mxu0 %v55
    %485 = vmatprep.subr.bf16.mxu0 0
    %486 = vmatpush1.bf16.msra.mxu0 0
    %487 = vmatprep.subr.bf16.mxu0 0
    %488 = vmatpush1.bf16.msra.mxu0 0
    %489 = vmatprep.subr.bf16.mxu0 0
    %490 = vmatpush1.bf16.msra.mxu0 0
    %491 = vmatprep.subr.bf16.mxu0 0
    %492 = vmatpush1.bf16.msra.mxu0 0
    %493 = vmatprep.subr.bf16.mxu0 0
    %494 = vmatpush1.bf16.msra.mxu0 0
    %495 = vmatprep.subr.bf16.mxu0 0
    %496 = vmatpush1.bf16.msra.mxu0 0
    %497 = vmatprep.subr.bf16.mxu0 0
    %498 = vmatpush1.bf16.msra.mxu0 0
    %499 = vmatprep.subr.bf16.mxu0 0
    %500 = vmatpush1.bf16.msra.mxu0 0
    %501 = vmatprep.subr.bf16.mxu0 0
    %502 = vmatpush1.bf16.msra.mxu0 0
    %503 = vmatprep.subr.bf16.mxu0 0
    %504 = vmatpush1.bf16.msra.mxu0 0
    %505 = vmatprep.subr.bf16.mxu0 0
    %506 = vmatpush1.bf16.msra.mxu0 0
    %507 = vmatprep.subr.bf16.mxu0 0
    %508 = vmatpush1.bf16.msra.mxu0 0
    %509 = vmatprep.mubr.bf16.mxu0 0
    %510 = vmatmul.mubr.bf16.gmra.mrb[0].mxu0 %v475
    %v511 = vpop.f32.mrb[0].mxu0
    %v512 = vadd.f32 0.0, %v511
    %v513 = vpop.f32.mrb[0].mxu0
    %v514 = vpop.f32.mrb[0].mxu0
    %v515 = vpop.f32.mrb[0].mxu0
    %516 = vdwg.mxu0
    %v517 = vadd.f32 %v150, %v512
    %v518 = vtanh.pop %v517
    %v519 = vsel %vm29, %v196, %v518
    %v520 = vsel %vm29, %v242, %v472
    %v521 = vsel %vm29, %v288, %v426
    %v522 = vsel %vm29, %v334, %v380
    %v523 = vsel %vm29, %v380, %v334
    %v524 = vsel %vm29, %v426, %v288
    %v525 = vsel %vm29, %v472, %v242
    %v526 = vsel %vm29, %v518, %v196
    %v527 = vpack.c.bf16 %v520, %v519
    %v528 = vpack.c.bf16 %v522, %v521
    %v529 = vpack.c.bf16 %v524, %v523
    %v530 = vpack.c.bf16 %v526, %v525
    %v531 = vld [vmem:[#allocation2 + $0x8] sm:$0xff]
    %v532 = vld [vmem:[#allocation2 + $0x10] sm:$0xff]
    %v533 = vld [vmem:[#allocation2 + $0x18] sm:$0xff]
    %v534 = vld [vmem:[#allocation2 + $0x20] sm:$0xff]
    %v535 = vld [vmem:[#allocation2 + $0x28] sm:$0xff]
    %v536 = vld [vmem:[#allocation2 + $0x30] sm:$0xff]
    %v537 = vld [vmem:[#allocation2 + $0x38] sm:$0xff]
    %v538 = vld [vmem:[#allocation2 + $0x40] sm:$0xff]
    %v539 = vpack.c.bf16 %v532, %v531
    %v540 = vpack.c.bf16 %v534, %v533
    %v541 = vpack.c.bf16 %v536, %v535
    %v542 = vpack.c.bf16 %v538, %v537
    %v543 = vld [vmem:[#allocation2 + $0x88] sm:$0xff]
    %v544 = vld [vmem:[#allocation2 + $0x90] sm:$0xff]
    %v545 = vld [vmem:[#allocation2 + $0x98] sm:$0xff]
    %v546 = vld [vmem:[#allocation2 + $0xa0] sm:$0xff]
    %v547 = vld [vmem:[#allocation2 + $0xa8] sm:$0xff]
    %v548 = vld [vmem:[#allocation2 + $0xb0] sm:$0xff]
    %v549 = vld [vmem:[#allocation2 + $0xb8] sm:$0xff]
    %v550 = vld [vmem:[#allocation2 + $0xc0] sm:$0xff]
    %v551 = vpack.c.bf16 %v544, %v543
    %v552 = vpack.c.bf16 %v546, %v545
    %v553 = vpack.c.bf16 %v548, %v547
    %v554 = vpack.c.bf16 %v550, %v549
    %v555 = vld [vmem:[#allocation2 + $0x130] sm:$0x1]
    %v556 = vlaneseq
    %v557 = vshrl.u32 %v556, 7
    %v558 = vsub.s32 0, %v557
    %v559 = vrot.slane %v555, %v558
    %v561 = vsel %vm151, %v527, 0
    %v564 = vsel %vm151, %v528, 0
    %v567 = vsel %vm151, %v529, 0
    %v570 = vsel %vm151, %v530, 0
    %572 = vmatprep.subr.bf16.mxu0 0
    %573 = vmatpush1.bf16.msra.mxu0 %v539
    %574 = vmatprep.subr.bf16.mxu0 0
    %575 = vmatpush1.bf16.msra.mxu0 %v540
    %576 = vmatprep.subr.bf16.mxu0 0
    %577 = vmatpush1.bf16.msra.mxu0 %v541
    %578 = vmatprep.subr.bf16.mxu0 0
    %579 = vmatpush1.bf16.msra.mxu0 %v542
    %580 = vmatprep.subr.bf16.mxu0 0
    %581 = vmatpush1.bf16.msra.mxu0 0
    %582 = vmatprep.subr.bf16.mxu0 0
    %583 = vmatpush1.bf16.msra.mxu0 0
    %584 = vmatprep.subr.bf16.mxu0 0
    %585 = vmatpush1.bf16.msra.mxu0 0
    %586 = vmatprep.subr.bf16.mxu0 0
    %587 = vmatpush1.bf16.msra.mxu0 0
    %588 = vmatprep.subr.bf16.mxu0 0
    %589 = vmatpush1.bf16.msra.mxu0 0
    %590 = vmatprep.subr.bf16.mxu0 0
    %591 = vmatpush1.bf16.msra.mxu0 0
    %592 = vmatprep.subr.bf16.mxu0 0
    %593 = vmatpush1.bf16.msra.mxu0 0
    %594 = vmatprep.subr.bf16.mxu0 0
    %595 = vmatpush1.bf16.msra.mxu0 0
    %596 = vmatprep.subr.bf16.mxu0 0
    %597 = vmatpush1.bf16.msra.mxu0 0
    %598 = vmatprep.subr.bf16.mxu0 0
    %599 = vmatpush1.bf16.msra.mxu0 0
    %600 = vmatprep.subr.bf16.mxu0 0
    %601 = vmatpush1.bf16.msra.mxu0 0
    %602 = vmatprep.subr.bf16.mxu0 0
    %603 = vmatpush1.bf16.msra.mxu0 0
    %604 = vmatprep.mubr.bf16.mxu0 0
    %605 = vmatmul.mubr.bf16.gmra.mrb[0].mxu0 %v561
    %v606 = vpop.f32.mrb[0].mxu0
    %v607 = vadd.f32 %v559, %v606
    %v608 = vpop.f32.mrb[0].mxu0
    %v609 = vpop.f32.mrb[0].mxu0
    %v610 = vadd.f32 %v559, %v609
    %v611 = vpop.f32.mrb[0].mxu0
    %612 = vmatprep.mubr.bf16.mxu0 0
    %613 = vmatmul.mubr.bf16.gmra.mrb[0].mxu0 %v564
    %v614 = vpop.f32.mrb[0].mxu0
    %v615 = vadd.f32 %v559, %v614
    %v616 = vpop.f32.mrb[0].mxu0
    %v617 = vpop.f32.mrb[0].mxu0
    %v618 = vadd.f32 %v559, %v617
    %v619 = vpop.f32.mrb[0].mxu0
    %620 = vmatprep.mubr.bf16.mxu0 0
    %621 = vmatmul.mubr.bf16.gmra.mrb[0].mxu0 %v567
    %v622 = vpop.f32.mrb[0].mxu0
    %v623 = vadd.f32 %v559, %v622
    %v624 = vpop.f32.mrb[0].mxu0
    %v625 = vpop.f32.mrb[0].mxu0
    %v626 = vadd.f32 %v559, %v625
    %v627 = vpop.f32.mrb[0].mxu0
    %628 = vmatprep.mubr.bf16.mxu0 0
    %629 = vmatmul.mubr.bf16.gmra.mrb[0].mxu0 %v570
    %v630 = vpop.f32.mrb[0].mxu0
    %v631 = vadd.f32 %v559, %v630
    %v632 = vpop.f32.mrb[0].mxu0
    %v633 = vpop.f32.mrb[0].mxu0
    %v634 = vadd.f32 %v559, %v633
    %v635 = vpop.f32.mrb[0].mxu0
    %636 = vdwg.mxu0
    %v637 = vsel %vm29, %v607, %v634
    %v638 = vsel %vm29, %v610, %v631
    %v639 = vsel %vm29, %v615, %v626
    %v640 = vsel %vm29, %v618, %v623
    %v641 = vsel %vm29, %v623, %v618
    %v642 = vsel %vm29, %v626, %v615
    %v643 = vsel %vm29, %v631, %v610
    %v644 = vsel %vm29, %v634, %v607
    %645 = vmatprep.subr.bf16.mxu0 0
    %646 = vmatpush1.bf16.msra.mxu0 %v551
    %647 = vmatprep.subr.bf16.mxu0 0
    %648 = vmatpush1.bf16.msra.mxu0 %v552
    %649 = vmatprep.subr.bf16.mxu0 0
    %650 = vmatpush1.bf16.msra.mxu0 %v553
    %651 = vmatprep.subr.bf16.mxu0 0
    %652 = vmatpush1.bf16.msra.mxu0 %v554
    %653 = vmatprep.subr.bf16.mxu0 0
    %654 = vmatpush1.bf16.msra.mxu0 0
    %655 = vmatprep.subr.bf16.mxu0 0
    %656 = vmatpush1.bf16.msra.mxu0 0
    %657 = vmatprep.subr.bf16.mxu0 0
    %658 = vmatpush1.bf16.msra.mxu0 0
    %659 = vmatprep.subr.bf16.mxu0 0
    %660 = vmatpush1.bf16.msra.mxu0 0
    %661 = vmatprep.subr.bf16.mxu0 0
    %662 = vmatpush1.bf16.msra.mxu0 0
    %663 = vmatprep.subr.bf16.mxu0 0
    %664 = vmatpush1.bf16.msra.mxu0 0
    %665 = vmatprep.subr.bf16.mxu0 0
    %666 = vmatpush1.bf16.msra.mxu0 0
    %667 = vmatprep.subr.bf16.mxu0 0
    %668 = vmatpush1.bf16.msra.mxu0 0
    %669 = vmatprep.subr.bf16.mxu0 0
    %670 = vmatpush1.bf16.msra.mxu0 0
    %671 = vmatprep.subr.bf16.mxu0 0
    %672 = vmatpush1.bf16.msra.mxu0 0
    %673 = vmatprep.subr.bf16.mxu0 0
    %674 = vmatpush1.bf16.msra.mxu0 0
    %675 = vmatprep.subr.bf16.mxu0 0
    %676 = vmatpush1.bf16.msra.mxu0 0
    %677 = vmatprep.mubr.bf16.mxu0 0
    %678 = vmatmul.mubr.bf16.gmra.mrb[0].mxu0 %v153
    %v679 = vpop.f32.mrb[0].mxu0
    %v680 = vadd.f32 0.0, %v679
    %v681 = vpop.f32.mrb[0].mxu0
    %v682 = vpop.f32.mrb[0].mxu0
    %v683 = vpop.f32.mrb[0].mxu0
    %684 = vdwg.mxu0
    %v685 = vadd.f32 %v637, %v680
    %v686 = vtanh.pop %v685
    %v687 = vpack.c.bf16 %v686, %v686
    %v689 = vsel %vm151, %v687, 0
    %691 = vmatprep.subr.bf16.mxu0 0
    %692 = vmatpush1.bf16.msra.mxu0 %v551
    %693 = vmatprep.subr.bf16.mxu0 0
    %694 = vmatpush1.bf16.msra.mxu0 %v552
    %695 = vmatprep.subr.bf16.mxu0 0
    %696 = vmatpush1.bf16.msra.mxu0 %v553
    %697 = vmatprep.subr.bf16.mxu0 0
    %698 = vmatpush1.bf16.msra.mxu0 %v554
    %699 = vmatprep.subr.bf16.mxu0 0
    %700 = vmatpush1.bf16.msra.mxu0 0
    %701 = vmatprep.subr.bf16.mxu0 0
    %702 = vmatpush1.bf16.msra.mxu0 0
    %703 = vmatprep.subr.bf16.mxu0 0
    %704 = vmatpush1.bf16.msra.mxu0 0
    %705 = vmatprep.subr.bf16.mxu0 0
    %706 = vmatpush1.bf16.msra.mxu0 0
    %707 = vmatprep.subr.bf16.mxu0 0
    %708 = vmatpush1.bf16.msra.mxu0 0
    %709 = vmatprep.subr.bf16.mxu0 0
    %710 = vmatpush1.bf16.msra.mxu0 0
    %711 = vmatprep.subr.bf16.mxu0 0
    %712 = vmatpush1.bf16.msra.mxu0 0
    %713 = vmatprep.subr.bf16.mxu0 0
    %714 = vmatpush1.bf16.msra.mxu0 0
    %715 = vmatprep.subr.bf16.mxu0 0
    %716 = vmatpush1.bf16.msra.mxu0 0
    %717 = vmatprep.subr.bf16.mxu0 0
    %718 = vmatpush1.bf16.msra.mxu0 0
    %719 = vmatprep.subr.bf16.mxu0 0
    %720 = vmatpush1.bf16.msra.mxu0 0
    %721 = vmatprep.subr.bf16.mxu0 0
    %722 = vmatpush1.bf16.msra.mxu0 0
    %723 = vmatprep.mubr.bf16.mxu0 0
    %724 = vmatmul.mubr.bf16.gmra.mrb[0].mxu0 %v689
    %v725 = vpop.f32.mrb[0].mxu0
    %v726 = vadd.f32 0.0, %v725
    %v727 = vpop.f32.mrb[0].mxu0
    %v728 = vpop.f32.mrb[0].mxu0
    %v729 = vpop.f32.mrb[0].mxu0
    %730 = vdwg.mxu0
    %v731 = vadd.f32 %v638, %v726
    %v732 = vtanh.pop %v731
    %v733 = vpack.c.bf16 %v732, %v732
    %v735 = vsel %vm151, %v733, 0
    %737 = vmatprep.subr.bf16.mxu0 0
    %738 = vmatpush1.bf16.msra.mxu0 %v551
    %739 = vmatprep.subr.bf16.mxu0 0
    %740 = vmatpush1.bf16.msra.mxu0 %v552
    %741 = vmatprep.subr.bf16.mxu0 0
    %742 = vmatpush1.bf16.msra.mxu0 %v553
    %743 = vmatprep.subr.bf16.mxu0 0
    %744 = vmatpush1.bf16.msra.mxu0 %v554
    %745 = vmatprep.subr.bf16.mxu0 0
    %746 = vmatpush1.bf16.msra.mxu0 0
    %747 = vmatprep.subr.bf16.mxu0 0
    %748 = vmatpush1.bf16.msra.mxu0 0
    %749 = vmatprep.subr.bf16.mxu0 0
    %750 = vmatpush1.bf16.msra.mxu0 0
    %751 = vmatprep.subr.bf16.mxu0 0
    %752 = vmatpush1.bf16.msra.mxu0 0
    %753 = vmatprep.subr.bf16.mxu0 0
    %754 = vmatpush1.bf16.msra.mxu0 0
    %755 = vmatprep.subr.bf16.mxu0 0
    %756 = vmatpush1.bf16.msra.mxu0 0
    %757 = vmatprep.subr.bf16.mxu0 0
    %758 = vmatpush1.bf16.msra.mxu0 0
    %759 = vmatprep.subr.bf16.mxu0 0
    %760 = vmatpush1.bf16.msra.mxu0 0
    %761 = vmatprep.subr.bf16.mxu0 0
    %762 = vmatpush1.bf16.msra.mxu0 0
    %763 = vmatprep.subr.bf16.mxu0 0
    %764 = vmatpush1.bf16.msra.mxu0 0
    %765 = vmatprep.subr.bf16.mxu0 0
    %766 = vmatpush1.bf16.msra.mxu0 0
    %767 = vmatprep.subr.bf16.mxu0 0
    %768 = vmatpush1.bf16.msra.mxu0 0
    %769 = vmatprep.mubr.bf16.mxu0 0
    %770 = vmatmul.mubr.bf16.gmra.mrb[0].mxu0 %v735
    %v771 = vpop.f32.mrb[0].mxu0
    %v772 = vadd.f32 0.0, %v771
    %v773 = vpop.f32.mrb[0].mxu0
    %v774 = vpop.f32.mrb[0].mxu0
    %v775 = vpop.f32.mrb[0].mxu0
    %776 = vdwg.mxu0
    %v777 = vadd.f32 %v639, %v772
    %v778 = vtanh.pop %v777
    %v779 = vpack.c.bf16 %v778, %v778
    %v781 = vsel %vm151, %v779, 0
    %783 = vmatprep.subr.bf16.mxu0 0
    %784 = vmatpush1.bf16.msra.mxu0 %v551
    %785 = vmatprep.subr.bf16.mxu0 0
    %786 = vmatpush1.bf16.msra.mxu0 %v552
    %787 = vmatprep.subr.bf16.mxu0 0
    %788 = vmatpush1.bf16.msra.mxu0 %v553
    %789 = vmatprep.subr.bf16.mxu0 0
    %790 = vmatpush1.bf16.msra.mxu0 %v554
    %791 = vmatprep.subr.bf16.mxu0 0
    %792 = vmatpush1.bf16.msra.mxu0 0
    %793 = vmatprep.subr.bf16.mxu0 0
    %794 = vmatpush1.bf16.msra.mxu0 0
    %795 = vmatprep.subr.bf16.mxu0 0
    %796 = vmatpush1.bf16.msra.mxu0 0
    %797 = vmatprep.subr.bf16.mxu0 0
    %798 = vmatpush1.bf16.msra.mxu0 0
    %799 = vmatprep.subr.bf16.mxu0 0
    %800 = vmatpush1.bf16.msra.mxu0 0
    %801 = vmatprep.subr.bf16.mxu0 0
    %802 = vmatpush1.bf16.msra.mxu0 0
    %803 = vmatprep.subr.bf16.mxu0 0
    %804 = vmatpush1.bf16.msra.mxu0 0
    %805 = vmatprep.subr.bf16.mxu0 0
    %806 = vmatpush1.bf16.msra.mxu0 0
    %807 = vmatprep.subr.bf16.mxu0 0
    %808 = vmatpush1.bf16.msra.mxu0 0
    %809 = vmatprep.subr.bf16.mxu0 0
    %810 = vmatpush1.bf16.msra.mxu0 0
    %811 = vmatprep.subr.bf16.mxu0 0
    %812 = vmatpush1.bf16.msra.mxu0 0
    %813 = vmatprep.subr.bf16.mxu0 0
    %814 = vmatpush1.bf16.msra.mxu0 0
    %815 = vmatprep.mubr.bf16.mxu0 0
    %816 = vmatmul.mubr.bf16.gmra.mrb[0].mxu0 %v781
    %v817 = vpop.f32.mrb[0].mxu0
    %v818 = vadd.f32 0.0, %v817
    %v819 = vpop.f32.mrb[0].mxu0
    %v820 = vpop.f32.mrb[0].mxu0
    %v821 = vpop.f32.mrb[0].mxu0
    %822 = vdwg.mxu0
    %v823 = vadd.f32 %v640, %v818
    %v824 = vtanh.pop %v823
    %v825 = vpack.c.bf16 %v824, %v824
    %v827 = vsel %vm151, %v825, 0
    %829 = vmatprep.subr.bf16.mxu0 0
    %830 = vmatpush1.bf16.msra.mxu0 %v551
    %831 = vmatprep.subr.bf16.mxu0 0
    %832 = vmatpush1.bf16.msra.mxu0 %v552
    %833 = vmatprep.subr.bf16.mxu0 0
    %834 = vmatpush1.bf16.msra.mxu0 %v553
    %835 = vmatprep.subr.bf16.mxu0 0
    %836 = vmatpush1.bf16.msra.mxu0 %v554
    %837 = vmatprep.subr.bf16.mxu0 0
    %838 = vmatpush1.bf16.msra.mxu0 0
    %839 = vmatprep.subr.bf16.mxu0 0
    %840 = vmatpush1.bf16.msra.mxu0 0
    %841 = vmatprep.subr.bf16.mxu0 0
    %842 = vmatpush1.bf16.msra.mxu0 0
    %843 = vmatprep.subr.bf16.mxu0 0
    %844 = vmatpush1.bf16.msra.mxu0 0
    %845 = vmatprep.subr.bf16.mxu0 0
    %846 = vmatpush1.bf16.msra.mxu0 0
    %847 = vmatprep.subr.bf16.mxu0 0
    %848 = vmatpush1.bf16.msra.mxu0 0
    %849 = vmatprep.subr.bf16.mxu0 0
    %850 = vmatpush1.bf16.msra.mxu0 0
    %851 = vmatprep.subr.bf16.mxu0 0
    %852 = vmatpush1.bf16.msra.mxu0 0
    %853 = vmatprep.subr.bf16.mxu0 0
    %854 = vmatpush1.bf16.msra.mxu0 0
    %855 = vmatprep.subr.bf16.mxu0 0
    %856 = vmatpush1.bf16.msra.mxu0 0
    %857 = vmatprep.subr.bf16.mxu0 0
    %858 = vmatpush1.bf16.msra.mxu0 0
    %859 = vmatprep.subr.bf16.mxu0 0
    %860 = vmatpush1.bf16.msra.mxu0 0
    %861 = vmatprep.mubr.bf16.mxu0 0
    %862 = vmatmul.mubr.bf16.gmra.mrb[0].mxu0 %v827
    %v863 = vpop.f32.mrb[0].mxu0
    %v864 = vadd.f32 0.0, %v863
    %v865 = vpop.f32.mrb[0].mxu0
    %v866 = vpop.f32.mrb[0].mxu0
    %v867 = vpop.f32.mrb[0].mxu0
    %868 = vdwg.mxu0
    %v869 = vadd.f32 %v641, %v864
    %v870 = vtanh.pop %v869
    %v871 = vpack.c.bf16 %v870, %v870
    %v873 = vsel %vm151, %v871, 0
    %875 = vmatprep.subr.bf16.mxu0 0
    %876 = vmatpush1.bf16.msra.mxu0 %v551
    %877 = vmatprep.subr.bf16.mxu0 0
    %878 = vmatpush1.bf16.msra.mxu0 %v552
    %879 = vmatprep.subr.bf16.mxu0 0
    %880 = vmatpush1.bf16.msra.mxu0 %v553
    %881 = vmatprep.subr.bf16.mxu0 0
    %882 = vmatpush1.bf16.msra.mxu0 %v554
    %883 = vmatprep.subr.bf16.mxu0 0
    %884 = vmatpush1.bf16.msra.mxu0 0
    %885 = vmatprep.subr.bf16.mxu0 0
    %886 = vmatpush1.bf16.msra.mxu0 0
    %887 = vmatprep.subr.bf16.mxu0 0
    %888 = vmatpush1.bf16.msra.mxu0 0
    %889 = vmatprep.subr.bf16.mxu0 0
    %890 = vmatpush1.bf16.msra.mxu0 0
    %891 = vmatprep.subr.bf16.mxu0 0
    %892 = vmatpush1.bf16.msra.mxu0 0
    %893 = vmatprep.subr.bf16.mxu0 0
    %894 = vmatpush1.bf16.msra.mxu0 0
    %895 = vmatprep.subr.bf16.mxu0 0
    %896 = vmatpush1.bf16.msra.mxu0 0
    %897 = vmatprep.subr.bf16.mxu0 0
    %898 = vmatpush1.bf16.msra.mxu0 0
    %899 = vmatprep.subr.bf16.mxu0 0
    %900 = vmatpush1.bf16.msra.mxu0 0
    %901 = vmatprep.subr.bf16.mxu0 0
    %902 = vmatpush1.bf16.msra.mxu0 0
    %903 = vmatprep.subr.bf16.mxu0 0
    %904 = vmatpush1.bf16.msra.mxu0 0
    %905 = vmatprep.subr.bf16.mxu0 0
    %906 = vmatpush1.bf16.msra.mxu0 0
    %907 = vmatprep.mubr.bf16.mxu0 0
    %908 = vmatmul.mubr.bf16.gmra.mrb[0].mxu0 %v873
    %v909 = vpop.f32.mrb[0].mxu0
    %v910 = vadd.f32 0.0, %v909
    %v911 = vpop.f32.mrb[0].mxu0
    %v912 = vpop.f32.mrb[0].mxu0
    %v913 = vpop.f32.mrb[0].mxu0
    %914 = vdwg.mxu0
    %v915 = vadd.f32 %v642, %v910
    %v916 = vtanh.pop %v915
    %v917 = vpack.c.bf16 %v916, %v916
    %v919 = vsel %vm151, %v917, 0
    %921 = vmatprep.subr.bf16.mxu0 0
    %922 = vmatpush1.bf16.msra.mxu0 %v551
    %923 = vmatprep.subr.bf16.mxu0 0
    %924 = vmatpush1.bf16.msra.mxu0 %v552
    %925 = vmatprep.subr.bf16.mxu0 0
    %926 = vmatpush1.bf16.msra.mxu0 %v553
    %927 = vmatprep.subr.bf16.mxu0 0
    %928 = vmatpush1.bf16.msra.mxu0 %v554
    %929 = vmatprep.subr.bf16.mxu0 0
    %930 = vmatpush1.bf16.msra.mxu0 0
    %931 = vmatprep.subr.bf16.mxu0 0
    %932 = vmatpush1.bf16.msra.mxu0 0
    %933 = vmatprep.subr.bf16.mxu0 0
    %934 = vmatpush1.bf16.msra.mxu0 0
    %935 = vmatprep.subr.bf16.mxu0 0
    %936 = vmatpush1.bf16.msra.mxu0 0
    %937 = vmatprep.subr.bf16.mxu0 0
    %938 = vmatpush1.bf16.msra.mxu0 0
    %939 = vmatprep.subr.bf16.mxu0 0
    %940 = vmatpush1.bf16.msra.mxu0 0
    %941 = vmatprep.subr.bf16.mxu0 0
    %942 = vmatpush1.bf16.msra.mxu0 0
    %943 = vmatprep.subr.bf16.mxu0 0
    %944 = vmatpush1.bf16.msra.mxu0 0
    %945 = vmatprep.subr.bf16.mxu0 0
    %946 = vmatpush1.bf16.msra.mxu0 0
    %947 = vmatprep.subr.bf16.mxu0 0
    %948 = vmatpush1.bf16.msra.mxu0 0
    %949 = vmatprep.subr.bf16.mxu0 0
    %950 = vmatpush1.bf16.msra.mxu0 0
    %951 = vmatprep.subr.bf16.mxu0 0
    %952 = vmatpush1.bf16.msra.mxu0 0
    %953 = vmatprep.mubr.bf16.mxu0 0
    %954 = vmatmul.mubr.bf16.gmra.mrb[0].mxu0 %v919
    %v955 = vpop.f32.mrb[0].mxu0
    %v956 = vadd.f32 0.0, %v955
    %v957 = vpop.f32.mrb[0].mxu0
    %v958 = vpop.f32.mrb[0].mxu0
    %v959 = vpop.f32.mrb[0].mxu0
    %960 = vdwg.mxu0
    %v961 = vadd.f32 %v643, %v956
    %v962 = vtanh.pop %v961
    %v963 = vpack.c.bf16 %v962, %v962
    %v965 = vsel %vm151, %v963, 0
    %967 = vmatprep.subr.bf16.mxu0 0
    %968 = vmatpush1.bf16.msra.mxu0 %v551
    %969 = vmatprep.subr.bf16.mxu0 0
    %970 = vmatpush1.bf16.msra.mxu0 %v552
    %971 = vmatprep.subr.bf16.mxu0 0
    %972 = vmatpush1.bf16.msra.mxu0 %v553
    %973 = vmatprep.subr.bf16.mxu0 0
    %974 = vmatpush1.bf16.msra.mxu0 %v554
    %975 = vmatprep.subr.bf16.mxu0 0
    %976 = vmatpush1.bf16.msra.mxu0 0
    %977 = vmatprep.subr.bf16.mxu0 0
    %978 = vmatpush1.bf16.msra.mxu0 0
    %979 = vmatprep.subr.bf16.mxu0 0
    %980 = vmatpush1.bf16.msra.mxu0 0
    %981 = vmatprep.subr.bf16.mxu0 0
    %982 = vmatpush1.bf16.msra.mxu0 0
    %983 = vmatprep.subr.bf16.mxu0 0
    %984 = vmatpush1.bf16.msra.mxu0 0
    %985 = vmatprep.subr.bf16.mxu0 0
    %986 = vmatpush1.bf16.msra.mxu0 0
    %987 = vmatprep.subr.bf16.mxu0 0
    %988 = vmatpush1.bf16.msra.mxu0 0
    %989 = vmatprep.subr.bf16.mxu0 0
    %990 = vmatpush1.bf16.msra.mxu0 0
    %991 = vmatprep.subr.bf16.mxu0 0
    %992 = vmatpush1.bf16.msra.mxu0 0
    %993 = vmatprep.subr.bf16.mxu0 0
    %994 = vmatpush1.bf16.msra.mxu0 0
    %995 = vmatprep.subr.bf16.mxu0 0
    %996 = vmatpush1.bf16.msra.mxu0 0
    %997 = vmatprep.subr.bf16.mxu0 0
    %998 = vmatpush1.bf16.msra.mxu0 0
    %999 = vmatprep.mubr.bf16.mxu0 0
    %1000 = vmatmul.mubr.bf16.gmra.mrb[0].mxu0 %v965
    %v1001 = vpop.f32.mrb[0].mxu0
    %v1002 = vadd.f32 0.0, %v1001
    %v1003 = vpop.f32.mrb[0].mxu0
    %v1004 = vpop.f32.mrb[0].mxu0
    %v1005 = vpop.f32.mrb[0].mxu0
    %1006 = vdwg.mxu0
    %v1007 = vadd.f32 %v644, %v1002
    %v1008 = vtanh.pop %v1007
    %v1009 = vsel %vm29, %v1008, %v686
    %v1010 = vld [vmem:[#allocation2 + $0xc8] sm:$0xff]
    %v1011 = vld [vmem:[#allocation2 + $0xd0] sm:$0xff]
    %v1012 = vld [vmem:[#allocation2 + $0xd8] sm:$0xff]
    %v1013 = vld [vmem:[#allocation2 + $0xe0] sm:$0xff]
    %v1014 = vld [vmem:[#allocation2 + $0xe8] sm:$0xff]
    %v1015 = vld [vmem:[#allocation2 + $0xf0] sm:$0xff]
    %v1016 = vld [vmem:[#allocation2 + $0xf8] sm:$0xff]
    %v1017 = vld [vmem:[#allocation2 + $0x100] sm:$0xff]
    %v1018 = vpack.c.bf16 %v1011, %v1010
    %v1019 = vpack.c.bf16 %v1013, %v1012
    %v1020 = vpack.c.bf16 %v1015, %v1014
    %v1021 = vpack.c.bf16 %v1017, %v1016
    %v1022 = vld [vmem:[#allocation2 + $0x138] sm:$0x1]
    %v1023 = vld [vmem:[#allocation2 + $0x108] sm:$0xff]
    %v1024 = vld [vmem:[#allocation2 + $0x110] sm:$0xff]
    %v1025 = vld [vmem:[#allocation2 + $0x118] sm:$0xff]
    %v1026 = vld [vmem:[#allocation2 + $0x120] sm:$0xff]
    %v1027 = vpack.c.bf16 %v1024, %v1023
    %v1028 = vpack.c.bf16 %v1026, %v1025
    %v1029 = vld [vmem:[#allocation2 + $0x140] sm:$0x1]
    %v1030 = vpack.c.bf16 %v1009, %v1009
    %v1031 = vlaneseq
    %v1032 = vshrl.u32 %v1031, 7
    %v1033 = vsub.s32 0, %v1032
    %v1034 = vrot.slane %v1022, %v1033
    %v1036 = vsel %vm151, %v1030, 0
    %1038 = vmatprep.subr.bf16.mxu0 0
    %1039 = vmatpush1.bf16.msra.mxu0 %v1018
    %1040 = vmatprep.subr.bf16.mxu0 0
    %1041 = vmatpush1.bf16.msra.mxu0 %v1019
    %1042 = vmatprep.subr.bf16.mxu0 0
    %1043 = vmatpush1.bf16.msra.mxu0 %v1020
    %1044 = vmatprep.subr.bf16.mxu0 0
    %1045 = vmatpush1.bf16.msra.mxu0 %v1021
    %1046 = vmatprep.subr.bf16.mxu0 0
    %1047 = vmatpush1.bf16.msra.mxu0 0
    %1048 = vmatprep.subr.bf16.mxu0 0
    %1049 = vmatpush1.bf16.msra.mxu0 0
    %1050 = vmatprep.subr.bf16.mxu0 0
    %1051 = vmatpush1.bf16.msra.mxu0 0
    %1052 = vmatprep.subr.bf16.mxu0 0
    %1053 = vmatpush1.bf16.msra.mxu0 0
    %1054 = vmatprep.subr.bf16.mxu0 0
    %1055 = vmatpush1.bf16.msra.mxu0 0
    %1056 = vmatprep.subr.bf16.mxu0 0
    %1057 = vmatpush1.bf16.msra.mxu0 0
    %1058 = vmatprep.subr.bf16.mxu0 0
    %1059 = vmatpush1.bf16.msra.mxu0 0
    %1060 = vmatprep.subr.bf16.mxu0 0
    %1061 = vmatpush1.bf16.msra.mxu0 0
    %1062 = vmatprep.subr.bf16.mxu0 0
    %1063 = vmatpush1.bf16.msra.mxu0 0
    %1064 = vmatprep.subr.bf16.mxu0 0
    %1065 = vmatpush1.bf16.msra.mxu0 0
    %1066 = vmatprep.subr.bf16.mxu0 0
    %1067 = vmatpush1.bf16.msra.mxu0 0
    %1068 = vmatprep.subr.bf16.mxu0 0
    %1069 = vmatpush1.bf16.msra.mxu0 0
    %1070 = vmatprep.mubr.bf16.mxu0 0
    %1071 = vmatmul.mubr.bf16.gmra.mrb[0].mxu0 %v1036
    %v1072 = vpop.f32.mrb[0].mxu0
    %v1073 = vadd.f32 %v1034, %v1072
    %v1074 = vpop.f32.mrb[0].mxu0
    %v1075 = vpop.f32.mrb[0].mxu0
    %v1076 = vpop.f32.mrb[0].mxu0
    %1077 = vdwg.mxu0
    %v1078 = vmax.f32 %v1073, 0.0
    %v1079 = vpack.c.bf16 %v1078, %v1078
    %v1080 = vlaneseq
    %v1081 = vshrl.u32 %v1080, 7
    %v1082 = vsub.s32 0, %v1081
    %v1083 = vrot.slane %v1029, %v1082
    %vm1084 = vcmask 261120
    %v1086 = vsel %vm1084, %v1079, 0
    %1088 = vmatprep.subr.bf16.mxu0 0
    %1089 = vmatpush1.bf16.msra.mxu0 %v1027
    %1090 = vmatprep.subr.bf16.mxu0 0
    %1091 = vmatpush1.bf16.msra.mxu0 %v1028
    %1092 = vmatprep.subr.bf16.mxu0 0
    %1093 = vmatpush1.bf16.msra.mxu0 0
    %1094 = vmatprep.subr.bf16.mxu0 0
    %1095 = vmatpush1.bf16.msra.mxu0 0
    %1096 = vmatprep.subr.bf16.mxu0 0
    %1097 = vmatpush1.bf16.msra.mxu0 0
    %1098 = vmatprep.subr.bf16.mxu0 0
    %1099 = vmatpush1.bf16.msra.mxu0 0
    %1100 = vmatprep.subr.bf16.mxu0 0
    %1101 = vmatpush1.bf16.msra.mxu0 0
    %1102 = vmatprep.subr.bf16.mxu0 0
    %1103 = vmatpush1.bf16.msra.mxu0 0
    %1104 = vmatprep.subr.bf16.mxu0 0
    %1105 = vmatpush1.bf16.msra.mxu0 0
    %1106 = vmatprep.subr.bf16.mxu0 0
    %1107 = vmatpush1.bf16.msra.mxu0 0
    %1108 = vmatprep.subr.bf16.mxu0 0
    %1109 = vmatpush1.bf16.msra.mxu0 0
    %1110 = vmatprep.subr.bf16.mxu0 0
    %1111 = vmatpush1.bf16.msra.mxu0 0
    %1112 = vmatprep.subr.bf16.mxu0 0
    %1113 = vmatpush1.bf16.msra.mxu0 0
    %1114 = vmatprep.subr.bf16.mxu0 0
    %1115 = vmatpush1.bf16.msra.mxu0 0
    %1116 = vmatprep.subr.bf16.mxu0 0
    %1117 = vmatpush1.bf16.msra.mxu0 0
    %1118 = vmatprep.subr.bf16.mxu0 0
    %1119 = vmatpush1.bf16.msra.mxu0 0
    %1120 = vmatprep.mubr.bf16.mxu0 0
    %1121 = vmatmul.mubr.bf16.gmra.mrb[0].mxu0 %v1086
    %v1122 = vpop.f32.mrb[0].mxu0
    %v1123 = vadd.f32 %v1083, %v1122
    %v1124 = vpop.f32.mrb[0].mxu0
    %v1125 = vpop.f32.mrb[0].mxu0
    %v1126 = vpop.f32.mrb[0].mxu0
    %1127 = vdwg.mxu0
    %1128 = vst [vmem:[#allocation5] sm:$0xff] %v1123
    // Predicated region
    $region14: #{tpu_custom_call.1} parent=1 // pred_check
      _
    $region15: #{tpu_custom_call.1} parent=1 // pred_check_branch
      %1130 = sbr.rel (0) target = $region17
    $region16: #{tpu_custom_call.1} parent=1 // pred_region
      %s1132 = ssub.s32 128, 128
      %1133 = vsyncadd [#allocation4], %s1132
      %s1135 = sshll.u32 [#allocation5], 4
      %s1136 = int_to_ptr.vmem [resolvable:$true] %s1135
      %1138 = dma.vmem_to_hbm [thread:$0]  %s1136, 128, %s2, [#allocation4]
    $region17: #{tpu_custom_call.1} parent=1 // pred_fallthru
      _
    // Predicated region
    $region18: #{tpu_custom_call.1} parent=1 // pred_check
      _
    $region19: #{tpu_custom_call.1} parent=1 // pred_check_branch
      %1140 = sbr.rel (0) target = $region21
    $region20: #{tpu_custom_call.1} parent=1 // pred_region
      %1141 = dma.done [#allocation4], 128
    $region21: #{tpu_custom_call.1} parent=1 // pred_fallthru
      _
    %1142 = vsyncpa [#allocation3], 1
    %1143 = vsyncpa [#allocation4], 1

</llo_original>
